<compile_context>
chip_gen: v5e
topology: v5e:2x2
jax: 0.10.0
libtpu: 0.0.40
codegen_flags: <defaults>
</compile_context>

<pallas_src>
import functools

import jax
import jax.numpy as jnp
from jax.experimental import pallas as pl
from jax.experimental.pallas import tpu as pltpu

IN_DIM = 28 * 28                               # 784
DIMS = [(IN_DIM, 512), (512, 256), (256, 128), (128, 64), (64, 10)]
# Lane/MXU-dense padded dims (multiples of 128).
PAD_IN = [896, 512, 256, 128, 128]             # padded fan-in  per layer (K axes)
PAD_OUT = [512, 256, 128, 128, 128]            # padded fan-out per layer (N axes)
IN_PAD = PAD_IN[0]                             # 896 = 7 * 128
OUT_PAD = PAD_OUT[-1]                          # 128 (true logits = first 10 lanes)


def _round_up(n, m):
    return ((n + m - 1) // m) * m


def _choose_batch_tile(B):
    """Batch-tile rows. Multiple of 16 (bf16 sublane tile) for small B; multiple of 256 and up
    to 1024 rows for large B, keeping >=2 grid steps so v7x can shard over both TensorCores."""
    B16 = _round_up(B, 16)
    if B16 <= 256:
        return B16                                      # single small block
    n_chunks = pl.cdiv(B16, 256)                        # number of 256-row chunks of work
    chunks_per_tile = max(1, min(4, n_chunks // 2))     # <=1024 rows and >=2 grid steps
    return 256 * chunks_per_tile


def mlp_shallow_kernel(x_ref,
                       w1_ref, b1_ref,
                       w2_ref, b2_ref,
                       w3_ref, b3_ref,
                       w4_ref, b4_ref,
                       w5_ref, b5_ref,
                       o_ref):
    # 5 chained MXU matmuls, all weights resident in VMEM. bf16 operands, f32 accumulate,
    # bias-add + ReLU in f32, cast back to bf16 only as the next matmul's input.
    h = x_ref[...]                                                             # (TB, 896) bf16

    h = jnp.dot(h, w1_ref[...], preferred_element_type=jnp.float32) + b1_ref[...]
    h = jnp.maximum(h, 0.0).astype(jnp.bfloat16)                               # (TB, 512)

    h = jnp.dot(h, w2_ref[...], preferred_element_type=jnp.float32) + b2_ref[...]
    h = jnp.maximum(h, 0.0).astype(jnp.bfloat16)                               # (TB, 256)

    h = jnp.dot(h, w3_ref[...], preferred_element_type=jnp.float32) + b3_ref[...]
    h = jnp.maximum(h, 0.0).astype(jnp.bfloat16)                               # (TB, 128)

    h = jnp.dot(h, w4_ref[...], preferred_element_type=jnp.float32) + b4_ref[...]
    h = jnp.maximum(h, 0.0).astype(jnp.bfloat16)                               # (TB, 128) padded

    o = jnp.dot(h, w5_ref[...], preferred_element_type=jnp.float32) + b5_ref[...]
    o_ref[...] = o                                                             # (TB, 128) f32


def prepare_params(params):
    """One-time prep: transpose torch-style (out, in) -> (in, out), zero-pad every dim to its
    lane/MXU-dense size (PAD_IN/PAD_OUT), cast weights to bf16, keep biases in f32 as (1, out)."""
    prepped = []
    for i, (w, b) in enumerate(params):
        wt = jnp.asarray(w, jnp.float32).T                     # (in, out)
        bt = jnp.asarray(b, jnp.float32)[None, :]              # (1, out)
        wt = jnp.pad(wt, ((0, PAD_IN[i] - wt.shape[0]), (0, PAD_OUT[i] - wt.shape[1])))
        bt = jnp.pad(bt, ((0, 0), (0, PAD_OUT[i] - bt.shape[1])))
        prepped.append((wt.astype(jnp.bfloat16), bt))
    return tuple(prepped)


@jax.jit
def mlp_shallow_forward(x_nchw, prepped):
    """x_nchw: (B, 1, 28, 28). prepped: output of prepare_params. Returns logits (B, 10) f32."""
    B = x_nchw.shape[0]
    x = x_nchw.reshape(B, IN_DIM).astype(jnp.bfloat16)

    TB = _choose_batch_tile(B)
    B_pad = _round_up(B, TB)
    # Zero-pad batch rows to a whole number of tiles, and the feature dim 784 -> 896 so the
    # dominant first-matmul K axis is dense (784 = 3*256 + 16 would leave a ragged MXU tail).
    x = jnp.pad(x, ((0, B_pad - B), (0, IN_PAD - IN_DIM)))
    grid = (B_pad // TB,)

    (w1, b1), (w2, b2), (w3, b3), (w4, b4), (w5, b5) = prepped
    args = (x, w1, b1, w2, b2, w3, b3, w4, b4, w5, b5)

    def pinned(shape):
        # Weights/biases: same block every grid step -> stays resident in VMEM, no re-DMA.
        # Single-buffered: the default second buffer would just duplicate ~1.3 MB of weights.
        return pl.BlockSpec(shape, lambda i: (0, 0), pipeline_mode=pl.Buffered(1))

    in_specs = [pl.BlockSpec((TB, IN_PAD), lambda i: (i, 0))]
    for w, b in ((w1, b1), (w2, b2), (w3, b3), (w4, b4), (w5, b5)):
        in_specs.append(pinned(w.shape))
        in_specs.append(pinned(b.shape))

    out = pl.pallas_call(
        mlp_shallow_kernel,
        out_shape=jax.ShapeDtypeStruct((B_pad, OUT_PAD), jnp.float32),
        grid=grid,
        in_specs=in_specs,
        out_specs=pl.BlockSpec((TB, OUT_PAD), lambda i: (i, 0)),
        compiler_params=pltpu.CompilerParams(
            dimension_semantics=("parallel",),
            # TB=1024 footprint (~12 MB + temporaries) clears v5e's 16 MiB scoped default.
            vmem_limit_bytes=32 * 1024 * 1024,
        ),
    )(*args)

    return out[:B, :10]


def init_params(key):
    """Deterministic init matching the nn.Linear shapes of MLPShallow (torch layout: (out, in))."""
    params = []
    for i, (fan_in, fan_out) in enumerate(DIMS):
        kw, kb = jax.random.split(jax.random.fold_in(key, i))
        bound = 1.0 / jnp.sqrt(jnp.float32(fan_in))
        w = jax.random.uniform(kw, (fan_out, fan_in), jnp.float32, -bound, bound)
        b = jax.random.uniform(kb, (fan_out,), jnp.float32, -bound, bound)
        params.append((w, b))
    return params


def reference_forward(x_nchw, params, emulate_bf16=False):
    """Pure-JAX reference. If emulate_bf16, matmul inputs are bf16 with f32 accumulation,
    matching the kernel's numerics."""
    B = x_nchw.shape[0]
    h = x_nchw.reshape(B, IN_DIM).astype(jnp.float32)
    for i, (w, b) in enumerate(params):
        lhs, rhs = h, w.T
        if emulate_bf16:
            lhs, rhs = lhs.astype(jnp.bfloat16), rhs.astype(jnp.bfloat16)
        h = jnp.dot(lhs, rhs, preferred_element_type=jnp.float32) + b
        if i < len(params) - 1:
            h = jnp.maximum(h, 0.0)
    return h


if __name__ == "__main__":
    key = jax.random.PRNGKey(0)
    params = init_params(key)
    prepped = prepare_params(params)

    # Small shape consistent with the module: batch=2 images of (1, 28, 28).
    x = jax.random.normal(jax.random.fold_in(key, 100), (2, 1, 28, 28), jnp.float32)
    out = jax.block_until_ready(mlp_shallow_forward(x, prepped))
    assert out.shape == (2, 10), out.shape

    # Tight check vs a reference that emulates the kernel's bf16-in / f32-accumulate numerics.
    ref_bf16 = reference_forward(x, params, emulate_bf16=True)
    assert jnp.allclose(out, ref_bf16, atol=2e-3, rtol=2e-3), "mismatch vs bf16-emulated reference"
    # Loose sanity check vs the full-f32 torch-equivalent forward.
    ref_f32 = reference_forward(x, params, emulate_bf16=False)
    assert jnp.max(jnp.abs(out - ref_f32)) < 5e-2, "too far from f32 reference"

    # Exercise the multi-tile path (TB=256, grid=(2,), padded batch rows sliced away).
    x2 = jax.random.normal(jax.random.fold_in(key, 200), (300, 1, 28, 28), jnp.float32)
    out2 = jax.block_until_ready(mlp_shallow_forward(x2, prepped))
    assert out2.shape == (300, 10), out2.shape
    ref2 = reference_forward(x2, params, emulate_bf16=True)
    assert jnp.allclose(out2, ref2, atol=2e-3, rtol=2e-3), "mismatch on multi-tile path"

    print("KERNEL_OK")
</pallas_src>

<mosaic_0001>
module attributes {stable_mosaic.version = 11 : i64} {
  func.func @mlp_shallow_kernel(%arg0: i32, %arg1: memref<16x896xbf16, #tpu.memory_space<vmem>>, %arg2: memref<896x512xbf16, #tpu.memory_space<vmem>>, %arg3: memref<1x512xf32, #tpu.memory_space<vmem>>, %arg4: memref<512x256xbf16, #tpu.memory_space<vmem>>, %arg5: memref<1x256xf32, #tpu.memory_space<vmem>>, %arg6: memref<256x128xbf16, #tpu.memory_space<vmem>>, %arg7: memref<1x128xf32, #tpu.memory_space<vmem>>, %arg8: memref<128x128xbf16, #tpu.memory_space<vmem>>, %arg9: memref<1x128xf32, #tpu.memory_space<vmem>>, %arg10: memref<128x128xbf16, #tpu.memory_space<vmem>>, %arg11: memref<1x128xf32, #tpu.memory_space<vmem>>, %arg12: memref<16x128xf32, #tpu.memory_space<vmem>>) attributes {dimension_semantics = [#tpu.dimension_semantics<parallel>], iteration_bounds = array<i64: 1>, scalar_prefetch = 0 : i64, scratch_operands = 0 : i64, tpu.core_type = #tpu.core_type<tc>, window_params = [{transform_indices = @transform_0, window_bounds = array<i64: 16, 896>}, {pipeline_mode = #tpu.pipeline_mode<synchronous>, transform_indices = @transform_1, window_bounds = array<i64: 896, 512>}, {pipeline_mode = #tpu.pipeline_mode<synchronous>, transform_indices = @transform_2, window_bounds = array<i64: 1, 512>}, {pipeline_mode = #tpu.pipeline_mode<synchronous>, transform_indices = @transform_3, window_bounds = array<i64: 512, 256>}, {pipeline_mode = #tpu.pipeline_mode<synchronous>, transform_indices = @transform_4, window_bounds = array<i64: 1, 256>}, {pipeline_mode = #tpu.pipeline_mode<synchronous>, transform_indices = @transform_5, window_bounds = array<i64: 256, 128>}, {pipeline_mode = #tpu.pipeline_mode<synchronous>, transform_indices = @transform_6, window_bounds = array<i64: 1, 128>}, {pipeline_mode = #tpu.pipeline_mode<synchronous>, transform_indices = @transform_7, window_bounds = array<i64: 128, 128>}, {pipeline_mode = #tpu.pipeline_mode<synchronous>, transform_indices = @transform_8, window_bounds = array<i64: 1, 128>}, {pipeline_mode = #tpu.pipeline_mode<synchronous>, transform_indices = @transform_9, window_bounds = array<i64: 128, 128>}, {pipeline_mode = #tpu.pipeline_mode<synchronous>, transform_indices = @transform_10, window_bounds = array<i64: 1, 128>}, {transform_indices = @transform_11, window_bounds = array<i64: 16, 128>}]} {
    %c0 = arith.constant 0 : index
    %c0_0 = arith.constant 0 : index
    %0 = vector.load %arg1[%c0, %c0_0] : memref<16x896xbf16, #tpu.memory_space<vmem>>, vector<16x896xbf16>
    %c0_1 = arith.constant 0 : index
    %c0_2 = arith.constant 0 : index
    %1 = vector.load %arg2[%c0_1, %c0_2] : memref<896x512xbf16, #tpu.memory_space<vmem>>, vector<896x512xbf16>
    %cst = arith.constant dense<0.000000e+00> : vector<16x512xf32>
    %2 = tpu.matmul %0, %1, %cst {dimension_numbers = #tpu.dot_dimension_numbers<[1], [0], [0], [1], [0, 0, 1, 1], [], []>} : vector<16x896xbf16>, vector<896x512xbf16>, vector<16x512xf32> -> vector<16x512xf32>
    %c0_3 = arith.constant 0 : index
    %c0_4 = arith.constant 0 : index
    %3 = vector.load %arg3[%c0_3, %c0_4] : memref<1x512xf32, #tpu.memory_space<vmem>>, vector<1x512xf32>
    %4 = vector.broadcast %3 : vector<1x512xf32> to vector<16x512xf32>
    %5 = arith.addf %2, %4 : vector<16x512xf32>
    %cst_5 = arith.constant 0.000000e+00 : f32
    %6 = vector.broadcast %cst_5 : f32 to vector<16x512xf32>
    %7 = arith.maximumf %5, %6 : vector<16x512xf32>
    %8 = arith.truncf %7 : vector<16x512xf32> to vector<16x512xbf16>
    %c0_6 = arith.constant 0 : index
    %c0_7 = arith.constant 0 : index
    %9 = vector.load %arg4[%c0_6, %c0_7] : memref<512x256xbf16, #tpu.memory_space<vmem>>, vector<512x256xbf16>
    %cst_8 = arith.constant dense<0.000000e+00> : vector<16x256xf32>
    %10 = tpu.matmul %8, %9, %cst_8 {dimension_numbers = #tpu.dot_dimension_numbers<[1], [0], [0], [1], [0, 0, 1, 1], [], []>} : vector<16x512xbf16>, vector<512x256xbf16>, vector<16x256xf32> -> vector<16x256xf32>
    %c0_9 = arith.constant 0 : index
    %c0_10 = arith.constant 0 : index
    %11 = vector.load %arg5[%c0_9, %c0_10] : memref<1x256xf32, #tpu.memory_space<vmem>>, vector<1x256xf32>
    %12 = vector.broadcast %11 : vector<1x256xf32> to vector<16x256xf32>
    %13 = arith.addf %10, %12 : vector<16x256xf32>
    %cst_11 = arith.constant 0.000000e+00 : f32
    %14 = vector.broadcast %cst_11 : f32 to vector<16x256xf32>
    %15 = arith.maximumf %13, %14 : vector<16x256xf32>
    %16 = arith.truncf %15 : vector<16x256xf32> to vector<16x256xbf16>
    %c0_12 = arith.constant 0 : index
    %c0_13 = arith.constant 0 : index
    %17 = vector.load %arg6[%c0_12, %c0_13] : memref<256x128xbf16, #tpu.memory_space<vmem>>, vector<256x128xbf16>
    %cst_14 = arith.constant dense<0.000000e+00> : vector<16x128xf32>
    %18 = tpu.matmul %16, %17, %cst_14 {dimension_numbers = #tpu.dot_dimension_numbers<[1], [0], [0], [1], [0, 0, 1, 1], [], []>} : vector<16x256xbf16>, vector<256x128xbf16>, vector<16x128xf32> -> vector<16x128xf32>
    %c0_15 = arith.constant 0 : index
    %c0_16 = arith.constant 0 : index
    %19 = vector.load %arg7[%c0_15, %c0_16] : memref<1x128xf32, #tpu.memory_space<vmem>>, vector<1x128xf32>
    %20 = vector.broadcast %19 : vector<1x128xf32> to vector<16x128xf32>
    %21 = arith.addf %18, %20 : vector<16x128xf32>
    %cst_17 = arith.constant 0.000000e+00 : f32
    %22 = vector.broadcast %cst_17 : f32 to vector<16x128xf32>
    %23 = arith.maximumf %21, %22 : vector<16x128xf32>
    %24 = arith.truncf %23 : vector<16x128xf32> to vector<16x128xbf16>
    %c0_18 = arith.constant 0 : index
    %c0_19 = arith.constant 0 : index
    %25 = vector.load %arg8[%c0_18, %c0_19] : memref<128x128xbf16, #tpu.memory_space<vmem>>, vector<128x128xbf16>
    %cst_20 = arith.constant dense<0.000000e+00> : vector<16x128xf32>
    %26 = tpu.matmul %24, %25, %cst_20 {dimension_numbers = #tpu.dot_dimension_numbers<[1], [0], [0], [1], [0, 0, 1, 1], [], []>} : vector<16x128xbf16>, vector<128x128xbf16>, vector<16x128xf32> -> vector<16x128xf32>
    %c0_21 = arith.constant 0 : index
    %c0_22 = arith.constant 0 : index
    %27 = vector.load %arg9[%c0_21, %c0_22] : memref<1x128xf32, #tpu.memory_space<vmem>>, vector<1x128xf32>
    %28 = vector.broadcast %27 : vector<1x128xf32> to vector<16x128xf32>
    %29 = arith.addf %26, %28 : vector<16x128xf32>
    %cst_23 = arith.constant 0.000000e+00 : f32
    %30 = vector.broadcast %cst_23 : f32 to vector<16x128xf32>
    %31 = arith.maximumf %29, %30 : vector<16x128xf32>
    %32 = arith.truncf %31 : vector<16x128xf32> to vector<16x128xbf16>
    %c0_24 = arith.constant 0 : index
    %c0_25 = arith.constant 0 : index
    %33 = vector.load %arg10[%c0_24, %c0_25] : memref<128x128xbf16, #tpu.memory_space<vmem>>, vector<128x128xbf16>
    %cst_26 = arith.constant dense<0.000000e+00> : vector<16x128xf32>
    %34 = tpu.matmul %32, %33, %cst_26 {dimension_numbers = #tpu.dot_dimension_numbers<[1], [0], [0], [1], [0, 0, 1, 1], [], []>} : vector<16x128xbf16>, vector<128x128xbf16>, vector<16x128xf32> -> vector<16x128xf32>
    %c0_27 = arith.constant 0 : index
    %c0_28 = arith.constant 0 : index
    %35 = vector.load %arg11[%c0_27, %c0_28] : memref<1x128xf32, #tpu.memory_space<vmem>>, vector<1x128xf32>
    %36 = vector.broadcast %35 : vector<1x128xf32> to vector<16x128xf32>
    %37 = arith.addf %34, %36 : vector<16x128xf32>
    %c0_29 = arith.constant 0 : index
    %c0_30 = arith.constant 0 : index
    %38 = vector.load %arg12[%c0_29, %c0_30] : memref<16x128xf32, #tpu.memory_space<vmem>>, vector<16x128xf32>
    tpu.vector_store %arg12[%c0_29, %c0_30], %37 {strides = array<i32>} : memref<16x128xf32, #tpu.memory_space<vmem>>, vector<16x128xf32>,
    return
  }
  func.func @transform_0(%arg0: i32) -> (i32, i32) {
    %c0_i32 = arith.constant 0 : i32
    %c0_i32_0 = arith.constant 0 : i32
    return %arg0, %c0_i32 : i32, i32
  }
  func.func @transform_1(%arg0: i32) -> (i32, i32) {
    %c0_i32 = arith.constant 0 : i32
    %c0_i32_0 = arith.constant 0 : i32
    %c0_i32_1 = arith.constant 0 : i32
    return %c0_i32, %c0_i32_0 : i32, i32
  }
  func.func @transform_2(%arg0: i32) -> (i32, i32) {
    %c0_i32 = arith.constant 0 : i32
    %c0_i32_0 = arith.constant 0 : i32
    %c0_i32_1 = arith.constant 0 : i32
    return %c0_i32, %c0_i32_0 : i32, i32
  }
  func.func @transform_3(%arg0: i32) -> (i32, i32) {
    %c0_i32 = arith.constant 0 : i32
    %c0_i32_0 = arith.constant 0 : i32
    %c0_i32_1 = arith.constant 0 : i32
    return %c0_i32, %c0_i32_0 : i32, i32
  }
  func.func @transform_4(%arg0: i32) -> (i32, i32) {
    %c0_i32 = arith.constant 0 : i32
    %c0_i32_0 = arith.constant 0 : i32
    %c0_i32_1 = arith.constant 0 : i32
    return %c0_i32, %c0_i32_0 : i32, i32
  }
  func.func @transform_5(%arg0: i32) -> (i32, i32) {
    %c0_i32 = arith.constant 0 : i32
    %c0_i32_0 = arith.constant 0 : i32
    %c0_i32_1 = arith.constant 0 : i32
    return %c0_i32, %c0_i32_0 : i32, i32
  }
  func.func @transform_6(%arg0: i32) -> (i32, i32) {
    %c0_i32 = arith.constant 0 : i32
    %c0_i32_0 = arith.constant 0 : i32
    %c0_i32_1 = arith.constant 0 : i32
    return %c0_i32, %c0_i32_0 : i32, i32
  }
  func.func @transform_7(%arg0: i32) -> (i32, i32) {
    %c0_i32 = arith.constant 0 : i32
    %c0_i32_0 = arith.constant 0 : i32
    %c0_i32_1 = arith.constant 0 : i32
    return %c0_i32, %c0_i32_0 : i32, i32
  }
  func.func @transform_8(%arg0: i32) -> (i32, i32) {
    %c0_i32 = arith.constant 0 : i32
    %c0_i32_0 = arith.constant 0 : i32
    %c0_i32_1 = arith.constant 0 : i32
    return %c0_i32, %c0_i32_0 : i32, i32
  }
  func.func @transform_9(%arg0: i32) -> (i32, i32) {
    %c0_i32 = arith.constant 0 : i32
    %c0_i32_0 = arith.constant 0 : i32
    %c0_i32_1 = arith.constant 0 : i32
    return %c0_i32, %c0_i32_0 : i32, i32
  }
  func.func @transform_10(%arg0: i32) -> (i32, i32) {
    %c0_i32 = arith.constant 0 : i32
    %c0_i32_0 = arith.constant 0 : i32
    %c0_i32_1 = arith.constant 0 : i32
    return %c0_i32, %c0_i32_0 : i32, i32
  }
  func.func @transform_11(%arg0: i32) -> (i32, i32) {
    %c0_i32 = arith.constant 0 : i32
    %c0_i32_0 = arith.constant 0 : i32
    return %arg0, %c0_i32 : i32, i32
  }
}

</mosaic_0001>

<llo_original>
// kernel: mlp_shallow_forward.1
$region0: #{mlp_shallow_forward.1}
  #allocation0 [shape = 'u32[]', space=smem, size = 0x4, offset = 0x4, fixed_abs, tag = 'smem constant byte address 0x4 - core index']
  #allocation1 [shape = 'u32[72,128]{1,0:T(1,128)}', space=vmem, size = 0x9000, scoped, tag = 'internal scratch']
  %s0 = inlined_call_operand.vmem [shape: bf16[16,896], index: 0, kind: input, shape index: {}]
  %s1 = inlined_call_operand.hbm [shape: bf16[896,512], index: 1, kind: input, shape index: {}]
  %s2 = inlined_call_operand.hbm [shape: f32[1,512], index: 2, kind: input, shape index: {}]
  %s3 = inlined_call_operand.hbm [shape: bf16[512,256], index: 3, kind: input, shape index: {}]
  %s4 = inlined_call_operand.vmem [shape: f32[1,256], index: 4, kind: input, shape index: {}]
  %s5 = inlined_call_operand.vmem [shape: bf16[256,128], index: 5, kind: input, shape index: {}]
  %s6 = inlined_call_operand.vmem [shape: f32[1,128], index: 6, kind: input, shape index: {}]
  %s7 = inlined_call_operand.vmem [shape: bf16[128,128], index: 7, kind: input, shape index: {}]
  %s8 = inlined_call_operand.vmem [shape: f32[1,128], index: 8, kind: input, shape index: {}]
  %s9 = inlined_call_operand.hbm [shape: bf16[128,128], index: 9, kind: input, shape index: {}]
  %s10 = inlined_call_operand.vmem [shape: f32[1,128], index: 10, kind: input, shape index: {}]
  %s11 = inlined_call_operand.vmem [shape: f32[16,128], index: 11, kind: output, shape index: {}]
  %s12 = sld [smem:[#allocation0]]
  $region70: #{mlp_shallow_forward.1} parent=0
    _
  %s14 = ssub.s32 1, %s12
  %s15 = scalar_select 0, %s14, %s12
  $region1: #{mlp_shallow_forward.1} parent=0
    #allocation2 [shape = 'u8[917504]{0}', space=vmem, size = 0xe0000, scoped, tag = 'input window, operand 1, single buffered']
    #allocation3 [shape = 's32[1]{0}', space=sflag, size = 0x4, scoped, tag = 'scoped memory for mlp_shallow_forward.1']
    #allocation4 [shape = 'u8[2048]{0}', space=vmem, size = 0x800, scoped, tag = 'input window, operand 2, single buffered']
    #allocation5 [shape = 's32[1]{0}', space=sflag, size = 0x4, scoped, tag = 'scoped memory for mlp_shallow_forward.1']
    #allocation6 [shape = 'u8[262144]{0}', space=vmem, size = 0x40000, scoped, tag = 'input window, operand 3, single buffered']
    #allocation7 [shape = 'u8[32768]{0}', space=vmem, size = 0x8000, scoped, tag = 'input window, operand 9, single buffered']
    #allocation8 [shape = 's32[1]{0}', space=sflag, size = 0x4, scoped, tag = 'scoped memory for mlp_shallow_forward.1']
    %16 = vsyncpa [#allocation3], 0
    %17 = vsyncpa [#allocation5], 0
    %18 = vsyncpa [#allocation8], 0
    // Predicated region
    $region2: #{mlp_shallow_forward.1} parent=1 // pred_check
      _
    $region3: #{mlp_shallow_forward.1} parent=1 // pred_check_branch
      %20 = sbr.rel (0) target = $region5
    $region4: #{mlp_shallow_forward.1} parent=1 // pred_region
      _
    $region5: #{mlp_shallow_forward.1} parent=1 // pred_fallthru
      _
    // Predicated region
    $region6: #{mlp_shallow_forward.1} parent=1 // pred_check
      _
    $region7: #{mlp_shallow_forward.1} parent=1 // pred_check_branch
      %22 = sbr.rel (0) target = $region9
    $region8: #{mlp_shallow_forward.1} parent=1 // pred_region
      %24 = vsyncadd [#allocation3], 0
      %s25 = sshll.u32 %s1, 4
      %s26 = int_to_ptr.hbm [resolvable:$true] %s25
      %s27 = sshll.u32 [#allocation2], 4
      %s28 = int_to_ptr.vmem [resolvable:$true] %s27
      %33 = dma.hbm_to_vmem [thread:$0]  %s26, 28672, %s28, [#allocation3], 256, 256, 16
    $region9: #{mlp_shallow_forward.1} parent=1 // pred_fallthru
      _
    // Predicated region
    $region10: #{mlp_shallow_forward.1} parent=1 // pred_check
      _
    $region11: #{mlp_shallow_forward.1} parent=1 // pred_check_branch
      %35 = sbr.rel (0) target = $region13
    $region12: #{mlp_shallow_forward.1} parent=1 // pred_region
      %37 = vsyncadd [#allocation5], 0
      %s39 = sshll.u32 %s2, 4
      %s40 = int_to_ptr.hbm [resolvable:$true] %s39
      %s41 = sshll.u32 [#allocation4], 4
      %s42 = int_to_ptr.vmem [resolvable:$true] %s41
      %44 = dma.hbm_to_vmem [thread:$0]  %s40, 64, %s42, [#allocation5]
    $region13: #{mlp_shallow_forward.1} parent=1 // pred_fallthru
      _
    // Predicated region
    $region14: #{mlp_shallow_forward.1} parent=1 // pred_check
      _
    $region15: #{mlp_shallow_forward.1} parent=1 // pred_check_branch
      %46 = sbr.rel (0) target = $region17
    $region16: #{mlp_shallow_forward.1} parent=1 // pred_region
      %48 = vsyncadd [#allocation5], 0
      %s49 = sshll.u32 %s3, 4
      %s50 = int_to_ptr.hbm [resolvable:$true] %s49
      %s51 = sshll.u32 [#allocation6], 4
      %s52 = int_to_ptr.vmem [resolvable:$true] %s51
      %57 = dma.hbm_to_vmem [thread:$0]  %s50, 8192, %s52, [#allocation5], 128, 128, 8
    $region17: #{mlp_shallow_forward.1} parent=1 // pred_fallthru
      _
    // Predicated region
    $region18: #{mlp_shallow_forward.1} parent=1 // pred_check
      _
    $region19: #{mlp_shallow_forward.1} parent=1 // pred_check_branch
      %59 = sbr.rel (0) target = $region21
    $region20: #{mlp_shallow_forward.1} parent=1 // pred_region
      _
    $region21: #{mlp_shallow_forward.1} parent=1 // pred_fallthru
      _
    // Predicated region
    $region22: #{mlp_shallow_forward.1} parent=1 // pred_check
      _
    $region23: #{mlp_shallow_forward.1} parent=1 // pred_check_branch
      %61 = sbr.rel (0) target = $region25
    $region24: #{mlp_shallow_forward.1} parent=1 // pred_region
      _
    $region25: #{mlp_shallow_forward.1} parent=1 // pred_fallthru
      _
    // Predicated region
    $region26: #{mlp_shallow_forward.1} parent=1 // pred_check
      _
    $region27: #{mlp_shallow_forward.1} parent=1 // pred_check_branch
      %63 = sbr.rel (0) target = $region29
    $region28: #{mlp_shallow_forward.1} parent=1 // pred_region
      _
    $region29: #{mlp_shallow_forward.1} parent=1 // pred_fallthru
      _
    // Predicated region
    $region30: #{mlp_shallow_forward.1} parent=1 // pred_check
      _
    $region31: #{mlp_shallow_forward.1} parent=1 // pred_check_branch
      %65 = sbr.rel (0) target = $region33
    $region32: #{mlp_shallow_forward.1} parent=1 // pred_region
      _
    $region33: #{mlp_shallow_forward.1} parent=1 // pred_fallthru
      _
    // Predicated region
    $region34: #{mlp_shallow_forward.1} parent=1 // pred_check
      _
    $region35: #{mlp_shallow_forward.1} parent=1 // pred_check_branch
      %67 = sbr.rel (0) target = $region37
    $region36: #{mlp_shallow_forward.1} parent=1 // pred_region
      _
    $region37: #{mlp_shallow_forward.1} parent=1 // pred_fallthru
      _
    // Predicated region
    $region38: #{mlp_shallow_forward.1} parent=1 // pred_check
      _
    $region39: #{mlp_shallow_forward.1} parent=1 // pred_check_branch
      %69 = sbr.rel (0) target = $region41
    $region40: #{mlp_shallow_forward.1} parent=1 // pred_region
      %71 = vsyncadd [#allocation8], 0
      %s72 = sshll.u32 %s9, 4
      %s73 = int_to_ptr.hbm [resolvable:$true] %s72
      %s74 = sshll.u32 [#allocation7], 4
      %s75 = int_to_ptr.vmem [resolvable:$true] %s74
      %80 = dma.hbm_to_vmem [thread:$0]  %s73, 1024, %s75, [#allocation8], 64, 64, 4
    $region41: #{mlp_shallow_forward.1} parent=1 // pred_fallthru
      _
    // Predicated region
    $region42: #{mlp_shallow_forward.1} parent=1 // pred_check
      _
    $region43: #{mlp_shallow_forward.1} parent=1 // pred_check_branch
      %82 = sbr.rel (0) target = $region45
    $region44: #{mlp_shallow_forward.1} parent=1 // pred_region
      _
    $region45: #{mlp_shallow_forward.1} parent=1 // pred_fallthru
      _
    // Predicated region
    $region46: #{mlp_shallow_forward.1} parent=1 // pred_check
      _
    $region47: #{mlp_shallow_forward.1} parent=1 // pred_check_branch
      %84 = sbr.rel (0) target = $region49
    $region48: #{mlp_shallow_forward.1} parent=1 // pred_region
      %86 = dma.done [#allocation3], 28672
    $region49: #{mlp_shallow_forward.1} parent=1 // pred_fallthru
      _
    // Predicated region
    $region50: #{mlp_shallow_forward.1} parent=1 // pred_check
      _
    $region51: #{mlp_shallow_forward.1} parent=1 // pred_check_branch
      %88 = sbr.rel (0) target = $region53
    $region52: #{mlp_shallow_forward.1} parent=1 // pred_region
      %90 = dma.done [#allocation5], 64
    $region53: #{mlp_shallow_forward.1} parent=1 // pred_fallthru
      _
    // Predicated region
    $region54: #{mlp_shallow_forward.1} parent=1 // pred_check
      _
    $region55: #{mlp_shallow_forward.1} parent=1 // pred_check_branch
      %92 = sbr.rel (0) target = $region57
    $region56: #{mlp_shallow_forward.1} parent=1 // pred_region
      %94 = dma.done [#allocation5], 8192
    $region57: #{mlp_shallow_forward.1} parent=1 // pred_fallthru
      _
    // Predicated region
    $region58: #{mlp_shallow_forward.1} parent=1 // pred_check
      _
    $region59: #{mlp_shallow_forward.1} parent=1 // pred_check_branch
      %96 = sbr.rel (0) target = $region61
    $region60: #{mlp_shallow_forward.1} parent=1 // pred_region
      %98 = dma.done [#allocation8], 1024
    $region61: #{mlp_shallow_forward.1} parent=1 // pred_fallthru
      _
    %v99 = vld [vmem:[%s0] sm:$0xff]
    %v100 = vld [vmem:[%s0 + $0x8] sm:$0xff]
    %v101 = vld [vmem:[%s0 + $0x10] sm:$0xff]
    %v102 = vld [vmem:[%s0 + $0x18] sm:$0xf]
    %v103 = vld [vmem:[%s0 + $0x1c] sm:$0xff]
    %v104 = vld [vmem:[%s0 + $0x24] sm:$0xff]
    %v105 = vld [vmem:[%s0 + $0x2c] sm:$0xff]
    %v106 = vld [vmem:[%s0 + $0x34] sm:$0xf]
    %v107 = vld [vmem:[#allocation2] sm:$0xff]
    %v108 = vld [vmem:[#allocation2 + $0x8] sm:$0xff]
    %v109 = vld [vmem:[#allocation2 + $0x10] sm:$0xff]
    %v110 = vld [vmem:[#allocation2 + $0x18] sm:$0xff]
    %v111 = vld [vmem:[#allocation2 + $0x20] sm:$0xff]
    %v112 = vld [vmem:[#allocation2 + $0x28] sm:$0xff]
    %v113 = vld [vmem:[#allocation2 + $0x30] sm:$0xff]
    %v114 = vld [vmem:[#allocation2 + $0x38] sm:$0xff]
    %v115 = vld [vmem:[#allocation2 + $0x40] sm:$0xff]
    %v116 = vld [vmem:[#allocation2 + $0x48] sm:$0xff]
    %v117 = vld [vmem:[#allocation2 + $0x50] sm:$0xff]
    %v118 = vld [vmem:[#allocation2 + $0x58] sm:$0xff]
    %v119 = vld [vmem:[#allocation2 + $0x60] sm:$0xff]
    %v120 = vld [vmem:[#allocation2 + $0x68] sm:$0xff]
    %v121 = vld [vmem:[#allocation2 + $0x70] sm:$0xff]
    %v122 = vld [vmem:[#allocation2 + $0x78] sm:$0xff]
    %v123 = vld [vmem:[#allocation2 + $0x80] sm:$0xff]
    %v124 = vld [vmem:[#allocation2 + $0x88] sm:$0xff]
    %v125 = vld [vmem:[#allocation2 + $0x90] sm:$0xff]
    %v126 = vld [vmem:[#allocation2 + $0x98] sm:$0xff]
    %v127 = vld [vmem:[#allocation2 + $0xa0] sm:$0xff]
    %v128 = vld [vmem:[#allocation2 + $0xa8] sm:$0xff]
    %v129 = vld [vmem:[#allocation2 + $0xb0] sm:$0xff]
    %v130 = vld [vmem:[#allocation2 + $0xb8] sm:$0xff]
    %v131 = vld [vmem:[#allocation2 + $0xc0] sm:$0xff]
    %v132 = vld [vmem:[#allocation2 + $0xc8] sm:$0xff]
    %v133 = vld [vmem:[#allocation2 + $0xd0] sm:$0xff]
    %v134 = vld [vmem:[#allocation2 + $0xd8] sm:$0xff]
    %v135 = vld [vmem:[#allocation2 + $0xe0] sm:$0xff]
    %v136 = vld [vmem:[#allocation2 + $0xe8] sm:$0xff]
    %v137 = vld [vmem:[#allocation2 + $0xf0] sm:$0xff]
    %v138 = vld [vmem:[#allocation2 + $0xf8] sm:$0xff]
    %v139 = vld [vmem:[#allocation2 + $0x100] sm:$0xff]
    %v140 = vld [vmem:[#allocation2 + $0x108] sm:$0xff]
    %v141 = vld [vmem:[#allocation2 + $0x110] sm:$0xff]
    %v142 = vld [vmem:[#allocation2 + $0x118] sm:$0xff]
    %v143 = vld [vmem:[#allocation2 + $0x120] sm:$0xff]
    %v144 = vld [vmem:[#allocation2 + $0x128] sm:$0xff]
    %v145 = vld [vmem:[#allocation2 + $0x130] sm:$0xff]
    %v146 = vld [vmem:[#allocation2 + $0x138] sm:$0xff]
    %v147 = vld [vmem:[#allocation2 + $0x140] sm:$0xff]
    %v148 = vld [vmem:[#allocation2 + $0x148] sm:$0xff]
    %v149 = vld [vmem:[#allocation2 + $0x150] sm:$0xff]
    %v150 = vld [vmem:[#allocation2 + $0x158] sm:$0xff]
    %v151 = vld [vmem:[#allocation2 + $0x160] sm:$0xff]
    %v152 = vld [vmem:[#allocation2 + $0x168] sm:$0xff]
    %v153 = vld [vmem:[#allocation2 + $0x170] sm:$0xff]
    %v154 = vld [vmem:[#allocation2 + $0x178] sm:$0xff]
    %v155 = vld [vmem:[#allocation2 + $0x180] sm:$0xff]
    %v156 = vld [vmem:[#allocation2 + $0x188] sm:$0xff]
    %v157 = vld [vmem:[#allocation2 + $0x190] sm:$0xff]
    %v158 = vld [vmem:[#allocation2 + $0x198] sm:$0xff]
    %v159 = vld [vmem:[#allocation2 + $0x1a0] sm:$0xff]
    %v160 = vld [vmem:[#allocation2 + $0x1a8] sm:$0xff]
    %v161 = vld [vmem:[#allocation2 + $0x1b0] sm:$0xff]
    %v162 = vld [vmem:[#allocation2 + $0x1b8] sm:$0xff]
    %v163 = vld [vmem:[#allocation2 + $0x1c0] sm:$0xff]
    %v164 = vld [vmem:[#allocation2 + $0x1c8] sm:$0xff]
    %v165 = vld [vmem:[#allocation2 + $0x1d0] sm:$0xff]
    %v166 = vld [vmem:[#allocation2 + $0x1d8] sm:$0xff]
    %v167 = vld [vmem:[#allocation2 + $0x1e0] sm:$0xff]
    %v168 = vld [vmem:[#allocation2 + $0x1e8] sm:$0xff]
    %v169 = vld [vmem:[#allocation2 + $0x1f0] sm:$0xff]
    %v170 = vld [vmem:[#allocation2 + $0x1f8] sm:$0xff]
    %v171 = vld [vmem:[#allocation2 + $0x200] sm:$0xff]
    %v172 = vld [vmem:[#allocation2 + $0x208] sm:$0xff]
    %v173 = vld [vmem:[#allocation2 + $0x210] sm:$0xff]
    %v174 = vld [vmem:[#allocation2 + $0x218] sm:$0xff]
    %v175 = vld [vmem:[#allocation2 + $0x220] sm:$0xff]
    %v176 = vld [vmem:[#allocation2 + $0x228] sm:$0xff]
    %v177 = vld [vmem:[#allocation2 + $0x230] sm:$0xff]
    %v178 = vld [vmem:[#allocation2 + $0x238] sm:$0xff]
    %v179 = vld [vmem:[#allocation2 + $0x240] sm:$0xff]
    %v180 = vld [vmem:[#allocation2 + $0x248] sm:$0xff]
    %v181 = vld [vmem:[#allocation2 + $0x250] sm:$0xff]
    %v182 = vld [vmem:[#allocation2 + $0x258] sm:$0xff]
    %v183 = vld [vmem:[#allocation2 + $0x260] sm:$0xff]
    %v184 = vld [vmem:[#allocation2 + $0x268] sm:$0xff]
    %v185 = vld [vmem:[#allocation2 + $0x270] sm:$0xff]
    %v186 = vld [vmem:[#allocation2 + $0x278] sm:$0xff]
    %v187 = vld [vmem:[#allocation2 + $0x280] sm:$0xff]
    %v188 = vld [vmem:[#allocation2 + $0x288] sm:$0xff]
    %v189 = vld [vmem:[#allocation2 + $0x290] sm:$0xff]
    %v190 = vld [vmem:[#allocation2 + $0x298] sm:$0xff]
    %v191 = vld [vmem:[#allocation2 + $0x2a0] sm:$0xff]
    %v192 = vld [vmem:[#allocation2 + $0x2a8] sm:$0xff]
    %v193 = vld [vmem:[#allocation2 + $0x2b0] sm:$0xff]
    %v194 = vld [vmem:[#allocation2 + $0x2b8] sm:$0xff]
    %v195 = vld [vmem:[#allocation2 + $0x2c0] sm:$0xff]
    %v196 = vld [vmem:[#allocation2 + $0x2c8] sm:$0xff]
    %v197 = vld [vmem:[#allocation2 + $0x2d0] sm:$0xff]
    %v198 = vld [vmem:[#allocation2 + $0x2d8] sm:$0xff]
    %v199 = vld [vmem:[#allocation2 + $0x2e0] sm:$0xff]
    %v200 = vld [vmem:[#allocation2 + $0x2e8] sm:$0xff]
    %v201 = vld [vmem:[#allocation2 + $0x2f0] sm:$0xff]
    %v202 = vld [vmem:[#allocation2 + $0x2f8] sm:$0xff]
    %v203 = vld [vmem:[#allocation2 + $0x300] sm:$0xff]
    %v204 = vld [vmem:[#allocation2 + $0x308] sm:$0xff]
    %v205 = vld [vmem:[#allocation2 + $0x310] sm:$0xff]
    %v206 = vld [vmem:[#allocation2 + $0x318] sm:$0xff]
    %v207 = vld [vmem:[#allocation2 + $0x320] sm:$0xff]
    %v208 = vld [vmem:[#allocation2 + $0x328] sm:$0xff]
    %v209 = vld [vmem:[#allocation2 + $0x330] sm:$0xff]
    %v210 = vld [vmem:[#allocation2 + $0x338] sm:$0xff]
    %v211 = vld [vmem:[#allocation2 + $0x340] sm:$0xff]
    %v212 = vld [vmem:[#allocation2 + $0x348] sm:$0xff]
    %v213 = vld [vmem:[#allocation2 + $0x350] sm:$0xff]
    %v214 = vld [vmem:[#allocation2 + $0x358] sm:$0xff]
    %v215 = vld [vmem:[#allocation2 + $0x360] sm:$0xff]
    %v216 = vld [vmem:[#allocation2 + $0x368] sm:$0xff]
    %v217 = vld [vmem:[#allocation2 + $0x370] sm:$0xff]
    %v218 = vld [vmem:[#allocation2 + $0x378] sm:$0xff]
    %v219 = vld [vmem:[#allocation2 + $0x380] sm:$0xff]
    %v220 = vld [vmem:[#allocation2 + $0x388] sm:$0xff]
    %v221 = vld [vmem:[#allocation2 + $0x390] sm:$0xff]
    %v222 = vld [vmem:[#allocation2 + $0x398] sm:$0xff]
    %v223 = vld [vmem:[#allocation2 + $0x3a0] sm:$0xff]
    %v224 = vld [vmem:[#allocation2 + $0x3a8] sm:$0xff]
    %v225 = vld [vmem:[#allocation2 + $0x3b0] sm:$0xff]
    %v226 = vld [vmem:[#allocation2 + $0x3b8] sm:$0xff]
    %v227 = vld [vmem:[#allocation2 + $0x3c0] sm:$0xff]
    %v228 = vld [vmem:[#allocation2 + $0x3c8] sm:$0xff]
    %v229 = vld [vmem:[#allocation2 + $0x3d0] sm:$0xff]
    %v230 = vld [vmem:[#allocation2 + $0x3d8] sm:$0xff]
    %v231 = vld [vmem:[#allocation2 + $0x3e0] sm:$0xff]
    %v232 = vld [vmem:[#allocation2 + $0x3e8] sm:$0xff]
    %v233 = vld [vmem:[#allocation2 + $0x3f0] sm:$0xff]
    %v234 = vld [vmem:[#allocation2 + $0x3f8] sm:$0xff]
    %v235 = vld [vmem:[#allocation2 + $0x400] sm:$0xff]
    %v236 = vld [vmem:[#allocation2 + $0x408] sm:$0xff]
    %v237 = vld [vmem:[#allocation2 + $0x410] sm:$0xff]
    %v238 = vld [vmem:[#allocation2 + $0x418] sm:$0xff]
    %v239 = vld [vmem:[#allocation2 + $0x420] sm:$0xff]
    %v240 = vld [vmem:[#allocation2 + $0x428] sm:$0xff]
    %v241 = vld [vmem:[#allocation2 + $0x430] sm:$0xff]
    %v242 = vld [vmem:[#allocation2 + $0x438] sm:$0xff]
    %v243 = vld [vmem:[#allocation2 + $0x440] sm:$0xff]
    %v244 = vld [vmem:[#allocation2 + $0x448] sm:$0xff]
    %v245 = vld [vmem:[#allocation2 + $0x450] sm:$0xff]
    %v246 = vld [vmem:[#allocation2 + $0x458] sm:$0xff]
    %v247 = vld [vmem:[#allocation2 + $0x460] sm:$0xff]
    %v248 = vld [vmem:[#allocation2 + $0x468] sm:$0xff]
    %v249 = vld [vmem:[#allocation2 + $0x470] sm:$0xff]
    %v250 = vld [vmem:[#allocation2 + $0x478] sm:$0xff]
    %v251 = vld [vmem:[#allocation2 + $0x480] sm:$0xff]
    %v252 = vld [vmem:[#allocation2 + $0x488] sm:$0xff]
    %v253 = vld [vmem:[#allocation2 + $0x490] sm:$0xff]
    %v254 = vld [vmem:[#allocation2 + $0x498] sm:$0xff]
    %v255 = vld [vmem:[#allocation2 + $0x4a0] sm:$0xff]
    %v256 = vld [vmem:[#allocation2 + $0x4a8] sm:$0xff]
    %v257 = vld [vmem:[#allocation2 + $0x4b0] sm:$0xff]
    %v258 = vld [vmem:[#allocation2 + $0x4b8] sm:$0xff]
    %v259 = vld [vmem:[#allocation2 + $0x4c0] sm:$0xff]
    %v260 = vld [vmem:[#allocation2 + $0x4c8] sm:$0xff]
    %v261 = vld [vmem:[#allocation2 + $0x4d0] sm:$0xff]
    %v262 = vld [vmem:[#allocation2 + $0x4d8] sm:$0xff]
    %v263 = vld [vmem:[#allocation2 + $0x4e0] sm:$0xff]
    %v264 = vld [vmem:[#allocation2 + $0x4e8] sm:$0xff]
    %v265 = vld [vmem:[#allocation2 + $0x4f0] sm:$0xff]
    %v266 = vld [vmem:[#allocation2 + $0x4f8] sm:$0xff]
    %v267 = vld [vmem:[#allocation2 + $0x500] sm:$0xff]
    %v268 = vld [vmem:[#allocation2 + $0x508] sm:$0xff]
    %v269 = vld [vmem:[#allocation2 + $0x510] sm:$0xff]
    %v270 = vld [vmem:[#allocation2 + $0x518] sm:$0xff]
    %v271 = vld [vmem:[#allocation2 + $0x520] sm:$0xff]
    %v272 = vld [vmem:[#allocation2 + $0x528] sm:$0xff]
    %v273 = vld [vmem:[#allocation2 + $0x530] sm:$0xff]
    %v274 = vld [vmem:[#allocation2 + $0x538] sm:$0xff]
    %v275 = vld [vmem:[#allocation2 + $0x540] sm:$0xff]
    %v276 = vld [vmem:[#allocation2 + $0x548] sm:$0xff]
    %v277 = vld [vmem:[#allocation2 + $0x550] sm:$0xff]
    %v278 = vld [vmem:[#allocation2 + $0x558] sm:$0xff]
    %v279 = vld [vmem:[#allocation2 + $0x560] sm:$0xff]
    %v280 = vld [vmem:[#allocation2 + $0x568] sm:$0xff]
    %v281 = vld [vmem:[#allocation2 + $0x570] sm:$0xff]
    %v282 = vld [vmem:[#allocation2 + $0x578] sm:$0xff]
    %v283 = vld [vmem:[#allocation2 + $0x580] sm:$0xff]
    %v284 = vld [vmem:[#allocation2 + $0x588] sm:$0xff]
    %v285 = vld [vmem:[#allocation2 + $0x590] sm:$0xff]
    %v286 = vld [vmem:[#allocation2 + $0x598] sm:$0xff]
    %v287 = vld [vmem:[#allocation2 + $0x5a0] sm:$0xff]
    %v288 = vld [vmem:[#allocation2 + $0x5a8] sm:$0xff]
    %v289 = vld [vmem:[#allocation2 + $0x5b0] sm:$0xff]
    %v290 = vld [vmem:[#allocation2 + $0x5b8] sm:$0xff]
    %v291 = vld [vmem:[#allocation2 + $0x5c0] sm:$0xff]
    %v292 = vld [vmem:[#allocation2 + $0x5c8] sm:$0xff]
    %v293 = vld [vmem:[#allocation2 + $0x5d0] sm:$0xff]
    %v294 = vld [vmem:[#allocation2 + $0x5d8] sm:$0xff]
    %v295 = vld [vmem:[#allocation2 + $0x5e0] sm:$0xff]
    %v296 = vld [vmem:[#allocation2 + $0x5e8] sm:$0xff]
    %v297 = vld [vmem:[#allocation2 + $0x5f0] sm:$0xff]
    %v298 = vld [vmem:[#allocation2 + $0x5f8] sm:$0xff]
    %v299 = vld [vmem:[#allocation2 + $0x600] sm:$0xff]
    %v300 = vld [vmem:[#allocation2 + $0x608] sm:$0xff]
    %v301 = vld [vmem:[#allocation2 + $0x610] sm:$0xff]
    %v302 = vld [vmem:[#allocation2 + $0x618] sm:$0xff]
    %v303 = vld [vmem:[#allocation2 + $0x620] sm:$0xff]
    %v304 = vld [vmem:[#allocation2 + $0x628] sm:$0xff]
    %v305 = vld [vmem:[#allocation2 + $0x630] sm:$0xff]
    %v306 = vld [vmem:[#allocation2 + $0x638] sm:$0xff]
    %v307 = vld [vmem:[#allocation2 + $0x640] sm:$0xff]
    %v308 = vld [vmem:[#allocation2 + $0x648] sm:$0xff]
    %v309 = vld [vmem:[#allocation2 + $0x650] sm:$0xff]
    %v310 = vld [vmem:[#allocation2 + $0x658] sm:$0xff]
    %v311 = vld [vmem:[#allocation2 + $0x660] sm:$0xff]
    %v312 = vld [vmem:[#allocation2 + $0x668] sm:$0xff]
    %v313 = vld [vmem:[#allocation2 + $0x670] sm:$0xff]
    %v314 = vld [vmem:[#allocation2 + $0x678] sm:$0xff]
    %v315 = vld [vmem:[#allocation2 + $0x680] sm:$0xff]
    %v316 = vld [vmem:[#allocation2 + $0x688] sm:$0xff]
    %v317 = vld [vmem:[#allocation2 + $0x690] sm:$0xff]
    %v318 = vld [vmem:[#allocation2 + $0x698] sm:$0xff]
    %v319 = vld [vmem:[#allocation2 + $0x6a0] sm:$0xff]
    %v320 = vld [vmem:[#allocation2 + $0x6a8] sm:$0xff]
    %v321 = vld [vmem:[#allocation2 + $0x6b0] sm:$0xff]
    %v322 = vld [vmem:[#allocation2 + $0x6b8] sm:$0xff]
    %v323 = vld [vmem:[#allocation2 + $0x6c0] sm:$0xff]
    %v324 = vld [vmem:[#allocation2 + $0x6c8] sm:$0xff]
    %v325 = vld [vmem:[#allocation2 + $0x6d0] sm:$0xff]
    %v326 = vld [vmem:[#allocation2 + $0x6d8] sm:$0xff]
    %v327 = vld [vmem:[#allocation2 + $0x6e0] sm:$0xff]
    %v328 = vld [vmem:[#allocation2 + $0x6e8] sm:$0xff]
    %v329 = vld [vmem:[#allocation2 + $0x6f0] sm:$0xff]
    %v330 = vld [vmem:[#allocation2 + $0x6f8] sm:$0xff]
    %v331 = vld [vmem:[#allocation4] sm:$0xf]
    %v333 = vperm.slane %v331, 0
    %v334 = vperm.slane %v331, 1
    %v335 = vperm.slane %v331, 2
    %v336 = vperm.slane %v331, 3
    %v349 = vunpack.c.l.b16 %v99
    %v350 = vunpack.c.h.b16 %v99
    %v351 = vunpack.c.l.b16 %v100
    %v352 = vunpack.c.h.b16 %v100
    %v353 = vunpack.c.l.b16 %v101
    %v354 = vunpack.c.h.b16 %v101
    %v355 = vunpack.c.l.b16 %v102
    %v356 = vunpack.c.l.b16 %v103
    %v357 = vunpack.c.h.b16 %v103
    %v358 = vunpack.c.l.b16 %v104
    %v359 = vunpack.c.h.b16 %v104
    %v360 = vunpack.c.l.b16 %v105
    %v361 = vunpack.c.h.b16 %v105
    %v362 = vunpack.c.l.b16 %v106
    %v363 = vpack.c.b16 %v356, %v349
    %v364 = vpack.c.b16 %v357, %v350
    %v365 = vpack.c.b16 %v358, %v351
    %v366 = vpack.c.b16 %v359, %v352
    %v367 = vpack.c.b16 %v360, %v353
    %v368 = vpack.c.b16 %v361, %v354
    %v369 = vpack.c.b16 %v362, %v355
    %v601 = vunpack.c.l.b16 %v107
    %v602 = vunpack.c.h.b16 %v107
    %v603 = vunpack.c.l.b16 %v108
    %v604 = vunpack.c.h.b16 %v108
    %v605 = vunpack.c.l.b16 %v109
    %v606 = vunpack.c.h.b16 %v109
    %v607 = vunpack.c.l.b16 %v110
    %v608 = vunpack.c.h.b16 %v110
    %v609 = vunpack.c.l.b16 %v111
    %v610 = vunpack.c.h.b16 %v111
    %v611 = vunpack.c.l.b16 %v112
    %v612 = vunpack.c.h.b16 %v112
    %v613 = vunpack.c.l.b16 %v113
    %v614 = vunpack.c.h.b16 %v113
    %v615 = vunpack.c.l.b16 %v114
    %v616 = vunpack.c.h.b16 %v114
    %v617 = vunpack.c.l.b16 %v115
    %v618 = vunpack.c.h.b16 %v115
    %v619 = vunpack.c.l.b16 %v116
    %v620 = vunpack.c.h.b16 %v116
    %v621 = vunpack.c.l.b16 %v117
    %v622 = vunpack.c.h.b16 %v117
    %v623 = vunpack.c.l.b16 %v118
    %v624 = vunpack.c.h.b16 %v118
    %v625 = vunpack.c.l.b16 %v119
    %v626 = vunpack.c.h.b16 %v119
    %v627 = vunpack.c.l.b16 %v120
    %v628 = vunpack.c.h.b16 %v120
    %v629 = vunpack.c.l.b16 %v121
    %v630 = vunpack.c.h.b16 %v121
    %v631 = vunpack.c.l.b16 %v122
    %v632 = vunpack.c.h.b16 %v122
    %v633 = vunpack.c.l.b16 %v123
    %v634 = vunpack.c.h.b16 %v123
    %v635 = vunpack.c.l.b16 %v124
    %v636 = vunpack.c.h.b16 %v124
    %v637 = vunpack.c.l.b16 %v125
    %v638 = vunpack.c.h.b16 %v125
    %v639 = vunpack.c.l.b16 %v126
    %v640 = vunpack.c.h.b16 %v126
    %v641 = vunpack.c.l.b16 %v127
    %v642 = vunpack.c.h.b16 %v127
    %v643 = vunpack.c.l.b16 %v128
    %v644 = vunpack.c.h.b16 %v128
    %v645 = vunpack.c.l.b16 %v129
    %v646 = vunpack.c.h.b16 %v129
    %v647 = vunpack.c.l.b16 %v130
    %v648 = vunpack.c.h.b16 %v130
    %v649 = vunpack.c.l.b16 %v131
    %v650 = vunpack.c.h.b16 %v131
    %v651 = vunpack.c.l.b16 %v132
    %v652 = vunpack.c.h.b16 %v132
    %v653 = vunpack.c.l.b16 %v133
    %v654 = vunpack.c.h.b16 %v133
    %v655 = vunpack.c.l.b16 %v134
    %v656 = vunpack.c.h.b16 %v134
    %v657 = vunpack.c.l.b16 %v135
    %v658 = vunpack.c.h.b16 %v135
    %v659 = vunpack.c.l.b16 %v136
    %v660 = vunpack.c.h.b16 %v136
    %v661 = vunpack.c.l.b16 %v137
    %v662 = vunpack.c.h.b16 %v137
    %v663 = vunpack.c.l.b16 %v138
    %v664 = vunpack.c.h.b16 %v138
    %v665 = vunpack.c.l.b16 %v139
    %v666 = vunpack.c.h.b16 %v139
    %v667 = vunpack.c.l.b16 %v140
    %v668 = vunpack.c.h.b16 %v140
    %v669 = vunpack.c.l.b16 %v141
    %v670 = vunpack.c.h.b16 %v141
    %v671 = vunpack.c.l.b16 %v142
    %v672 = vunpack.c.h.b16 %v142
    %v673 = vunpack.c.l.b16 %v143
    %v674 = vunpack.c.h.b16 %v143
    %v675 = vunpack.c.l.b16 %v144
    %v676 = vunpack.c.h.b16 %v144
    %v677 = vunpack.c.l.b16 %v145
    %v678 = vunpack.c.h.b16 %v145
    %v679 = vunpack.c.l.b16 %v146
    %v680 = vunpack.c.h.b16 %v146
    %v681 = vunpack.c.l.b16 %v147
    %v682 = vunpack.c.h.b16 %v147
    %v683 = vunpack.c.l.b16 %v148
    %v684 = vunpack.c.h.b16 %v148
    %v685 = vunpack.c.l.b16 %v149
    %v686 = vunpack.c.h.b16 %v149
    %v687 = vunpack.c.l.b16 %v150
    %v688 = vunpack.c.h.b16 %v150
    %v689 = vunpack.c.l.b16 %v151
    %v690 = vunpack.c.h.b16 %v151
    %v691 = vunpack.c.l.b16 %v152
    %v692 = vunpack.c.h.b16 %v152
    %v693 = vunpack.c.l.b16 %v153
    %v694 = vunpack.c.h.b16 %v153
    %v695 = vunpack.c.l.b16 %v154
    %v696 = vunpack.c.h.b16 %v154
    %v697 = vunpack.c.l.b16 %v155
    %v698 = vunpack.c.h.b16 %v155
    %v699 = vunpack.c.l.b16 %v156
    %v700 = vunpack.c.h.b16 %v156
    %v701 = vunpack.c.l.b16 %v157
    %v702 = vunpack.c.h.b16 %v157
    %v703 = vunpack.c.l.b16 %v158
    %v704 = vunpack.c.h.b16 %v158
    %v705 = vunpack.c.l.b16 %v159
    %v706 = vunpack.c.h.b16 %v159
    %v707 = vunpack.c.l.b16 %v160
    %v708 = vunpack.c.h.b16 %v160
    %v709 = vunpack.c.l.b16 %v161
    %v710 = vunpack.c.h.b16 %v161
    %v711 = vunpack.c.l.b16 %v162
    %v712 = vunpack.c.h.b16 %v162
    %v713 = vunpack.c.l.b16 %v163
    %v714 = vunpack.c.h.b16 %v163
    %v715 = vunpack.c.l.b16 %v164
    %v716 = vunpack.c.h.b16 %v164
    %v717 = vunpack.c.l.b16 %v165
    %v718 = vunpack.c.h.b16 %v165
    %v719 = vunpack.c.l.b16 %v166
    %v720 = vunpack.c.h.b16 %v166
    %v721 = vunpack.c.l.b16 %v167
    %v722 = vunpack.c.h.b16 %v167
    %v723 = vunpack.c.l.b16 %v168
    %v724 = vunpack.c.h.b16 %v168
    %v725 = vunpack.c.l.b16 %v169
    %v726 = vunpack.c.h.b16 %v169
    %v727 = vunpack.c.l.b16 %v170
    %v728 = vunpack.c.h.b16 %v170
    %v729 = vunpack.c.l.b16 %v171
    %v730 = vunpack.c.h.b16 %v171
    %v731 = vunpack.c.l.b16 %v172
    %v732 = vunpack.c.h.b16 %v172
    %v733 = vunpack.c.l.b16 %v173
    %v734 = vunpack.c.h.b16 %v173
    %v735 = vunpack.c.l.b16 %v174
    %v736 = vunpack.c.h.b16 %v174
    %v737 = vunpack.c.l.b16 %v175
    %v738 = vunpack.c.h.b16 %v175
    %v739 = vunpack.c.l.b16 %v176
    %v740 = vunpack.c.h.b16 %v176
    %v741 = vunpack.c.l.b16 %v177
    %v742 = vunpack.c.h.b16 %v177
    %v743 = vunpack.c.l.b16 %v178
    %v744 = vunpack.c.h.b16 %v178
    %v745 = vunpack.c.l.b16 %v179
    %v746 = vunpack.c.h.b16 %v179
    %v747 = vunpack.c.l.b16 %v180
    %v748 = vunpack.c.h.b16 %v180
    %v749 = vunpack.c.l.b16 %v181
    %v750 = vunpack.c.h.b16 %v181
    %v751 = vunpack.c.l.b16 %v182
    %v752 = vunpack.c.h.b16 %v182
    %v753 = vunpack.c.l.b16 %v183
    %v754 = vunpack.c.h.b16 %v183
    %v755 = vunpack.c.l.b16 %v184
    %v756 = vunpack.c.h.b16 %v184
    %v757 = vunpack.c.l.b16 %v185
    %v758 = vunpack.c.h.b16 %v185
    %v759 = vunpack.c.l.b16 %v186
    %v760 = vunpack.c.h.b16 %v186
    %v761 = vunpack.c.l.b16 %v187
    %v762 = vunpack.c.h.b16 %v187
    %v763 = vunpack.c.l.b16 %v188
    %v764 = vunpack.c.h.b16 %v188
    %v765 = vunpack.c.l.b16 %v189
    %v766 = vunpack.c.h.b16 %v189
    %v767 = vunpack.c.l.b16 %v190
    %v768 = vunpack.c.h.b16 %v190
    %v769 = vunpack.c.l.b16 %v191
    %v770 = vunpack.c.h.b16 %v191
    %v771 = vunpack.c.l.b16 %v192
    %v772 = vunpack.c.h.b16 %v192
    %v773 = vunpack.c.l.b16 %v193
    %v774 = vunpack.c.h.b16 %v193
    %v775 = vunpack.c.l.b16 %v194
    %v776 = vunpack.c.h.b16 %v194
    %v777 = vunpack.c.l.b16 %v195
    %v778 = vunpack.c.h.b16 %v195
    %v779 = vunpack.c.l.b16 %v196
    %v780 = vunpack.c.h.b16 %v196
    %v781 = vunpack.c.l.b16 %v197
    %v782 = vunpack.c.h.b16 %v197
    %v783 = vunpack.c.l.b16 %v198
    %v784 = vunpack.c.h.b16 %v198
    %v785 = vunpack.c.l.b16 %v199
    %v786 = vunpack.c.h.b16 %v199
    %v787 = vunpack.c.l.b16 %v200
    %v788 = vunpack.c.h.b16 %v200
    %v789 = vunpack.c.l.b16 %v201
    %v790 = vunpack.c.h.b16 %v201
    %v791 = vunpack.c.l.b16 %v202
    %v792 = vunpack.c.h.b16 %v202
    %v793 = vunpack.c.l.b16 %v203
    %v794 = vunpack.c.h.b16 %v203
    %v795 = vunpack.c.l.b16 %v204
    %v796 = vunpack.c.h.b16 %v204
    %v797 = vunpack.c.l.b16 %v205
    %v798 = vunpack.c.h.b16 %v205
    %v799 = vunpack.c.l.b16 %v206
    %v800 = vunpack.c.h.b16 %v206
    %v801 = vunpack.c.l.b16 %v207
    %v802 = vunpack.c.h.b16 %v207
    %v803 = vunpack.c.l.b16 %v208
    %v804 = vunpack.c.h.b16 %v208
    %v805 = vunpack.c.l.b16 %v209
    %v806 = vunpack.c.h.b16 %v209
    %v807 = vunpack.c.l.b16 %v210
    %v808 = vunpack.c.h.b16 %v210
    %v809 = vunpack.c.l.b16 %v211
    %v810 = vunpack.c.h.b16 %v211
    %v811 = vunpack.c.l.b16 %v212
    %v812 = vunpack.c.h.b16 %v212
    %v813 = vunpack.c.l.b16 %v213
    %v814 = vunpack.c.h.b16 %v213
    %v815 = vunpack.c.l.b16 %v214
    %v816 = vunpack.c.h.b16 %v214
    %v817 = vunpack.c.l.b16 %v215
    %v818 = vunpack.c.h.b16 %v215
    %v819 = vunpack.c.l.b16 %v216
    %v820 = vunpack.c.h.b16 %v216
    %v821 = vunpack.c.l.b16 %v217
    %v822 = vunpack.c.h.b16 %v217
    %v823 = vunpack.c.l.b16 %v218
    %v824 = vunpack.c.h.b16 %v218
    %v825 = vunpack.c.l.b16 %v219
    %v826 = vunpack.c.h.b16 %v219
    %v827 = vunpack.c.l.b16 %v220
    %v828 = vunpack.c.h.b16 %v220
    %v829 = vunpack.c.l.b16 %v221
    %v830 = vunpack.c.h.b16 %v221
    %v831 = vunpack.c.l.b16 %v222
    %v832 = vunpack.c.h.b16 %v222
    %v833 = vunpack.c.l.b16 %v223
    %v834 = vunpack.c.h.b16 %v223
    %v835 = vunpack.c.l.b16 %v224
    %v836 = vunpack.c.h.b16 %v224
    %v837 = vunpack.c.l.b16 %v225
    %v838 = vunpack.c.h.b16 %v225
    %v839 = vunpack.c.l.b16 %v226
    %v840 = vunpack.c.h.b16 %v226
    %v841 = vunpack.c.l.b16 %v227
    %v842 = vunpack.c.h.b16 %v227
    %v843 = vunpack.c.l.b16 %v228
    %v844 = vunpack.c.h.b16 %v228
    %v845 = vunpack.c.l.b16 %v229
    %v846 = vunpack.c.h.b16 %v229
    %v847 = vunpack.c.l.b16 %v230
    %v848 = vunpack.c.h.b16 %v230
    %v849 = vunpack.c.l.b16 %v231
    %v850 = vunpack.c.h.b16 %v231
    %v851 = vunpack.c.l.b16 %v232
    %v852 = vunpack.c.h.b16 %v232
    %v853 = vunpack.c.l.b16 %v233
    %v854 = vunpack.c.h.b16 %v233
    %v855 = vunpack.c.l.b16 %v234
    %v856 = vunpack.c.h.b16 %v234
    %v857 = vunpack.c.l.b16 %v235
    %v858 = vunpack.c.h.b16 %v235
    %v859 = vunpack.c.l.b16 %v236
    %v860 = vunpack.c.h.b16 %v236
    %v861 = vunpack.c.l.b16 %v237
    %v862 = vunpack.c.h.b16 %v237
    %v863 = vunpack.c.l.b16 %v238
    %v864 = vunpack.c.h.b16 %v238
    %v865 = vunpack.c.l.b16 %v239
    %v866 = vunpack.c.h.b16 %v239
    %v867 = vunpack.c.l.b16 %v240
    %v868 = vunpack.c.h.b16 %v240
    %v869 = vunpack.c.l.b16 %v241
    %v870 = vunpack.c.h.b16 %v241
    %v871 = vunpack.c.l.b16 %v242
    %v872 = vunpack.c.h.b16 %v242
    %v873 = vunpack.c.l.b16 %v243
    %v874 = vunpack.c.h.b16 %v243
    %v875 = vunpack.c.l.b16 %v244
    %v876 = vunpack.c.h.b16 %v244
    %v877 = vunpack.c.l.b16 %v245
    %v878 = vunpack.c.h.b16 %v245
    %v879 = vunpack.c.l.b16 %v246
    %v880 = vunpack.c.h.b16 %v246
    %v881 = vunpack.c.l.b16 %v247
    %v882 = vunpack.c.h.b16 %v247
    %v883 = vunpack.c.l.b16 %v248
    %v884 = vunpack.c.h.b16 %v248
    %v885 = vunpack.c.l.b16 %v249
    %v886 = vunpack.c.h.b16 %v249
    %v887 = vunpack.c.l.b16 %v250
    %v888 = vunpack.c.h.b16 %v250
    %v889 = vunpack.c.l.b16 %v251
    %v890 = vunpack.c.h.b16 %v251
    %v891 = vunpack.c.l.b16 %v252
    %v892 = vunpack.c.h.b16 %v252
    %v893 = vunpack.c.l.b16 %v253
    %v894 = vunpack.c.h.b16 %v253
    %v895 = vunpack.c.l.b16 %v254
    %v896 = vunpack.c.h.b16 %v254
    %v897 = vunpack.c.l.b16 %v255
    %v898 = vunpack.c.h.b16 %v255
    %v899 = vunpack.c.l.b16 %v256
    %v900 = vunpack.c.h.b16 %v256
    %v901 = vunpack.c.l.b16 %v257
    %v902 = vunpack.c.h.b16 %v257
    %v903 = vunpack.c.l.b16 %v258
    %v904 = vunpack.c.h.b16 %v258
    %v905 = vunpack.c.l.b16 %v259
    %v906 = vunpack.c.h.b16 %v259
    %v907 = vunpack.c.l.b16 %v260
    %v908 = vunpack.c.h.b16 %v260
    %v909 = vunpack.c.l.b16 %v261
    %v910 = vunpack.c.h.b16 %v261
    %v911 = vunpack.c.l.b16 %v262
    %v912 = vunpack.c.h.b16 %v262
    %v913 = vunpack.c.l.b16 %v263
    %v914 = vunpack.c.h.b16 %v263
    %v915 = vunpack.c.l.b16 %v264
    %v916 = vunpack.c.h.b16 %v264
    %v917 = vunpack.c.l.b16 %v265
    %v918 = vunpack.c.h.b16 %v265
    %v919 = vunpack.c.l.b16 %v266
    %v920 = vunpack.c.h.b16 %v266
    %v921 = vunpack.c.l.b16 %v267
    %v922 = vunpack.c.h.b16 %v267
    %v923 = vunpack.c.l.b16 %v268
    %v924 = vunpack.c.h.b16 %v268
    %v925 = vunpack.c.l.b16 %v269
    %v926 = vunpack.c.h.b16 %v269
    %v927 = vunpack.c.l.b16 %v270
    %v928 = vunpack.c.h.b16 %v270
    %v929 = vunpack.c.l.b16 %v271
    %v930 = vunpack.c.h.b16 %v271
    %v931 = vunpack.c.l.b16 %v272
    %v932 = vunpack.c.h.b16 %v272
    %v933 = vunpack.c.l.b16 %v273
    %v934 = vunpack.c.h.b16 %v273
    %v935 = vunpack.c.l.b16 %v274
    %v936 = vunpack.c.h.b16 %v274
    %v937 = vunpack.c.l.b16 %v275
    %v938 = vunpack.c.h.b16 %v275
    %v939 = vunpack.c.l.b16 %v276
    %v940 = vunpack.c.h.b16 %v276
    %v941 = vunpack.c.l.b16 %v277
    %v942 = vunpack.c.h.b16 %v277
    %v943 = vunpack.c.l.b16 %v278
    %v944 = vunpack.c.h.b16 %v278
    %v945 = vunpack.c.l.b16 %v279
    %v946 = vunpack.c.h.b16 %v279
    %v947 = vunpack.c.l.b16 %v280
    %v948 = vunpack.c.h.b16 %v280
    %v949 = vunpack.c.l.b16 %v281
    %v950 = vunpack.c.h.b16 %v281
    %v951 = vunpack.c.l.b16 %v282
    %v952 = vunpack.c.h.b16 %v282
    %v953 = vunpack.c.l.b16 %v283
    %v954 = vunpack.c.h.b16 %v283
    %v955 = vunpack.c.l.b16 %v284
    %v956 = vunpack.c.h.b16 %v284
    %v957 = vunpack.c.l.b16 %v285
    %v958 = vunpack.c.h.b16 %v285
    %v959 = vunpack.c.l.b16 %v286
    %v960 = vunpack.c.h.b16 %v286
    %v961 = vunpack.c.l.b16 %v287
    %v962 = vunpack.c.h.b16 %v287
    %v963 = vunpack.c.l.b16 %v288
    %v964 = vunpack.c.h.b16 %v288
    %v965 = vunpack.c.l.b16 %v289
    %v966 = vunpack.c.h.b16 %v289
    %v967 = vunpack.c.l.b16 %v290
    %v968 = vunpack.c.h.b16 %v290
    %v969 = vunpack.c.l.b16 %v291
    %v970 = vunpack.c.h.b16 %v291
    %v971 = vunpack.c.l.b16 %v292
    %v972 = vunpack.c.h.b16 %v292
    %v973 = vunpack.c.l.b16 %v293
    %v974 = vunpack.c.h.b16 %v293
    %v975 = vunpack.c.l.b16 %v294
    %v976 = vunpack.c.h.b16 %v294
    %v977 = vunpack.c.l.b16 %v295
    %v978 = vunpack.c.h.b16 %v295
    %v979 = vunpack.c.l.b16 %v296
    %v980 = vunpack.c.h.b16 %v296
    %v981 = vunpack.c.l.b16 %v297
    %v982 = vunpack.c.h.b16 %v297
    %v983 = vunpack.c.l.b16 %v298
    %v984 = vunpack.c.h.b16 %v298
    %v985 = vunpack.c.l.b16 %v299
    %v986 = vunpack.c.h.b16 %v299
    %v987 = vunpack.c.l.b16 %v300
    %v988 = vunpack.c.h.b16 %v300
    %v989 = vunpack.c.l.b16 %v301
    %v990 = vunpack.c.h.b16 %v301
    %v991 = vunpack.c.l.b16 %v302
    %v992 = vunpack.c.h.b16 %v302
    %v993 = vunpack.c.l.b16 %v303
    %v994 = vunpack.c.h.b16 %v303
    %v995 = vunpack.c.l.b16 %v304
    %v996 = vunpack.c.h.b16 %v304
    %v997 = vunpack.c.l.b16 %v305
    %v998 = vunpack.c.h.b16 %v305
    %v999 = vunpack.c.l.b16 %v306
    %v1000 = vunpack.c.h.b16 %v306
    %v1001 = vunpack.c.l.b16 %v307
    %v1002 = vunpack.c.h.b16 %v307
    %v1003 = vunpack.c.l.b16 %v308
    %v1004 = vunpack.c.h.b16 %v308
    %v1005 = vunpack.c.l.b16 %v309
    %v1006 = vunpack.c.h.b16 %v309
    %v1007 = vunpack.c.l.b16 %v310
    %v1008 = vunpack.c.h.b16 %v310
    %v1009 = vunpack.c.l.b16 %v311
    %v1010 = vunpack.c.h.b16 %v311
    %v1011 = vunpack.c.l.b16 %v312
    %v1012 = vunpack.c.h.b16 %v312
    %v1013 = vunpack.c.l.b16 %v313
    %v1014 = vunpack.c.h.b16 %v313
    %v1015 = vunpack.c.l.b16 %v314
    %v1016 = vunpack.c.h.b16 %v314
    %v1017 = vunpack.c.l.b16 %v315
    %v1018 = vunpack.c.h.b16 %v315
    %v1019 = vunpack.c.l.b16 %v316
    %v1020 = vunpack.c.h.b16 %v316
    %v1021 = vunpack.c.l.b16 %v317
    %v1022 = vunpack.c.h.b16 %v317
    %v1023 = vunpack.c.l.b16 %v318
    %v1024 = vunpack.c.h.b16 %v318
    %v1025 = vunpack.c.l.b16 %v319
    %v1026 = vunpack.c.h.b16 %v319
    %v1027 = vunpack.c.l.b16 %v320
    %v1028 = vunpack.c.h.b16 %v320
    %v1029 = vunpack.c.l.b16 %v321
    %v1030 = vunpack.c.h.b16 %v321
    %v1031 = vunpack.c.l.b16 %v322
    %v1032 = vunpack.c.h.b16 %v322
    %v1033 = vunpack.c.l.b16 %v323
    %v1034 = vunpack.c.h.b16 %v323
    %v1035 = vunpack.c.l.b16 %v324
    %v1036 = vunpack.c.h.b16 %v324
    %v1037 = vunpack.c.l.b16 %v325
    %v1038 = vunpack.c.h.b16 %v325
    %v1039 = vunpack.c.l.b16 %v326
    %v1040 = vunpack.c.h.b16 %v326
    %v1041 = vunpack.c.l.b16 %v327
    %v1042 = vunpack.c.h.b16 %v327
    %v1043 = vunpack.c.l.b16 %v328
    %v1044 = vunpack.c.h.b16 %v328
    %v1045 = vunpack.c.l.b16 %v329
    %v1046 = vunpack.c.h.b16 %v329
    %v1047 = vunpack.c.l.b16 %v330
    %v1048 = vunpack.c.h.b16 %v330
    %v1049 = vpack.c.b16 %v605, %v601
    %v1050 = vpack.c.b16 %v606, %v602
    %v1051 = vpack.c.b16 %v607, %v603
    %v1052 = vpack.c.b16 %v608, %v604
    %v1053 = vpack.c.b16 %v613, %v609
    %v1054 = vpack.c.b16 %v614, %v610
    %v1055 = vpack.c.b16 %v615, %v611
    %v1056 = vpack.c.b16 %v616, %v612
    %v1057 = vpack.c.b16 %v621, %v617
    %v1058 = vpack.c.b16 %v622, %v618
    %v1059 = vpack.c.b16 %v623, %v619
    %v1060 = vpack.c.b16 %v624, %v620
    %v1061 = vpack.c.b16 %v629, %v625
    %v1062 = vpack.c.b16 %v630, %v626
    %v1063 = vpack.c.b16 %v631, %v627
    %v1064 = vpack.c.b16 %v632, %v628
    %v1065 = vpack.c.b16 %v637, %v633
    %v1066 = vpack.c.b16 %v638, %v634
    %v1067 = vpack.c.b16 %v639, %v635
    %v1068 = vpack.c.b16 %v640, %v636
    %v1069 = vpack.c.b16 %v645, %v641
    %v1070 = vpack.c.b16 %v646, %v642
    %v1071 = vpack.c.b16 %v647, %v643
    %v1072 = vpack.c.b16 %v648, %v644
    %v1073 = vpack.c.b16 %v653, %v649
    %v1074 = vpack.c.b16 %v654, %v650
    %v1075 = vpack.c.b16 %v655, %v651
    %v1076 = vpack.c.b16 %v656, %v652
    %v1077 = vpack.c.b16 %v661, %v657
    %v1078 = vpack.c.b16 %v662, %v658
    %v1079 = vpack.c.b16 %v663, %v659
    %v1080 = vpack.c.b16 %v664, %v660
    %v1081 = vpack.c.b16 %v669, %v665
    %v1082 = vpack.c.b16 %v670, %v666
    %v1083 = vpack.c.b16 %v671, %v667
    %v1084 = vpack.c.b16 %v672, %v668
    %v1085 = vpack.c.b16 %v677, %v673
    %v1086 = vpack.c.b16 %v678, %v674
    %v1087 = vpack.c.b16 %v679, %v675
    %v1088 = vpack.c.b16 %v680, %v676
    %v1089 = vpack.c.b16 %v685, %v681
    %v1090 = vpack.c.b16 %v686, %v682
    %v1091 = vpack.c.b16 %v687, %v683
    %v1092 = vpack.c.b16 %v688, %v684
    %v1093 = vpack.c.b16 %v693, %v689
    %v1094 = vpack.c.b16 %v694, %v690
    %v1095 = vpack.c.b16 %v695, %v691
    %v1096 = vpack.c.b16 %v696, %v692
    %v1097 = vpack.c.b16 %v701, %v697
    %v1098 = vpack.c.b16 %v702, %v698
    %v1099 = vpack.c.b16 %v703, %v699
    %v1100 = vpack.c.b16 %v704, %v700
    %v1101 = vpack.c.b16 %v709, %v705
    %v1102 = vpack.c.b16 %v710, %v706
    %v1103 = vpack.c.b16 %v711, %v707
    %v1104 = vpack.c.b16 %v712, %v708
    %v1105 = vpack.c.b16 %v717, %v713
    %v1106 = vpack.c.b16 %v718, %v714
    %v1107 = vpack.c.b16 %v719, %v715
    %v1108 = vpack.c.b16 %v720, %v716
    %v1109 = vpack.c.b16 %v725, %v721
    %v1110 = vpack.c.b16 %v726, %v722
    %v1111 = vpack.c.b16 %v727, %v723
    %v1112 = vpack.c.b16 %v728, %v724
    %v1113 = vpack.c.b16 %v733, %v729
    %v1114 = vpack.c.b16 %v734, %v730
    %v1115 = vpack.c.b16 %v735, %v731
    %v1116 = vpack.c.b16 %v736, %v732
    %v1117 = vpack.c.b16 %v741, %v737
    %v1118 = vpack.c.b16 %v742, %v738
    %v1119 = vpack.c.b16 %v743, %v739
    %v1120 = vpack.c.b16 %v744, %v740
    %v1121 = vpack.c.b16 %v749, %v745
    %v1122 = vpack.c.b16 %v750, %v746
    %v1123 = vpack.c.b16 %v751, %v747
    %v1124 = vpack.c.b16 %v752, %v748
    %v1125 = vpack.c.b16 %v757, %v753
    %v1126 = vpack.c.b16 %v758, %v754
    %v1127 = vpack.c.b16 %v759, %v755
    %v1128 = vpack.c.b16 %v760, %v756
    %v1129 = vpack.c.b16 %v765, %v761
    %v1130 = vpack.c.b16 %v766, %v762
    %v1131 = vpack.c.b16 %v767, %v763
    %v1132 = vpack.c.b16 %v768, %v764
    %v1133 = vpack.c.b16 %v773, %v769
    %v1134 = vpack.c.b16 %v774, %v770
    %v1135 = vpack.c.b16 %v775, %v771
    %v1136 = vpack.c.b16 %v776, %v772
    %v1137 = vpack.c.b16 %v781, %v777
    %v1138 = vpack.c.b16 %v782, %v778
    %v1139 = vpack.c.b16 %v783, %v779
    %v1140 = vpack.c.b16 %v784, %v780
    %v1141 = vpack.c.b16 %v789, %v785
    %v1142 = vpack.c.b16 %v790, %v786
    %v1143 = vpack.c.b16 %v791, %v787
    %v1144 = vpack.c.b16 %v792, %v788
    %v1145 = vpack.c.b16 %v797, %v793
    %v1146 = vpack.c.b16 %v798, %v794
    %v1147 = vpack.c.b16 %v799, %v795
    %v1148 = vpack.c.b16 %v800, %v796
    %v1149 = vpack.c.b16 %v805, %v801
    %v1150 = vpack.c.b16 %v806, %v802
    %v1151 = vpack.c.b16 %v807, %v803
    %v1152 = vpack.c.b16 %v808, %v804
    %v1153 = vpack.c.b16 %v813, %v809
    %v1154 = vpack.c.b16 %v814, %v810
    %v1155 = vpack.c.b16 %v815, %v811
    %v1156 = vpack.c.b16 %v816, %v812
    %v1157 = vpack.c.b16 %v821, %v817
    %v1158 = vpack.c.b16 %v822, %v818
    %v1159 = vpack.c.b16 %v823, %v819
    %v1160 = vpack.c.b16 %v824, %v820
    %v1161 = vpack.c.b16 %v829, %v825
    %v1162 = vpack.c.b16 %v830, %v826
    %v1163 = vpack.c.b16 %v831, %v827
    %v1164 = vpack.c.b16 %v832, %v828
    %v1165 = vpack.c.b16 %v837, %v833
    %v1166 = vpack.c.b16 %v838, %v834
    %v1167 = vpack.c.b16 %v839, %v835
    %v1168 = vpack.c.b16 %v840, %v836
    %v1169 = vpack.c.b16 %v845, %v841
    %v1170 = vpack.c.b16 %v846, %v842
    %v1171 = vpack.c.b16 %v847, %v843
    %v1172 = vpack.c.b16 %v848, %v844
    %v1173 = vpack.c.b16 %v853, %v849
    %v1174 = vpack.c.b16 %v854, %v850
    %v1175 = vpack.c.b16 %v855, %v851
    %v1176 = vpack.c.b16 %v856, %v852
    %v1177 = vpack.c.b16 %v861, %v857
    %v1178 = vpack.c.b16 %v862, %v858
    %v1179 = vpack.c.b16 %v863, %v859
    %v1180 = vpack.c.b16 %v864, %v860
    %v1181 = vpack.c.b16 %v869, %v865
    %v1182 = vpack.c.b16 %v870, %v866
    %v1183 = vpack.c.b16 %v871, %v867
    %v1184 = vpack.c.b16 %v872, %v868
    %v1185 = vpack.c.b16 %v877, %v873
    %v1186 = vpack.c.b16 %v878, %v874
    %v1187 = vpack.c.b16 %v879, %v875
    %v1188 = vpack.c.b16 %v880, %v876
    %v1189 = vpack.c.b16 %v885, %v881
    %v1190 = vpack.c.b16 %v886, %v882
    %v1191 = vpack.c.b16 %v887, %v883
    %v1192 = vpack.c.b16 %v888, %v884
    %v1193 = vpack.c.b16 %v893, %v889
    %v1194 = vpack.c.b16 %v894, %v890
    %v1195 = vpack.c.b16 %v895, %v891
    %v1196 = vpack.c.b16 %v896, %v892
    %v1197 = vpack.c.b16 %v901, %v897
    %v1198 = vpack.c.b16 %v902, %v898
    %v1199 = vpack.c.b16 %v903, %v899
    %v1200 = vpack.c.b16 %v904, %v900
    %v1201 = vpack.c.b16 %v909, %v905
    %v1202 = vpack.c.b16 %v910, %v906
    %v1203 = vpack.c.b16 %v911, %v907
    %v1204 = vpack.c.b16 %v912, %v908
    %v1205 = vpack.c.b16 %v917, %v913
    %v1206 = vpack.c.b16 %v918, %v914
    %v1207 = vpack.c.b16 %v919, %v915
    %v1208 = vpack.c.b16 %v920, %v916
    %v1209 = vpack.c.b16 %v925, %v921
    %v1210 = vpack.c.b16 %v926, %v922
    %v1211 = vpack.c.b16 %v927, %v923
    %v1212 = vpack.c.b16 %v928, %v924
    %v1213 = vpack.c.b16 %v933, %v929
    %v1214 = vpack.c.b16 %v934, %v930
    %v1215 = vpack.c.b16 %v935, %v931
    %v1216 = vpack.c.b16 %v936, %v932
    %v1217 = vpack.c.b16 %v941, %v937
    %v1218 = vpack.c.b16 %v942, %v938
    %v1219 = vpack.c.b16 %v943, %v939
    %v1220 = vpack.c.b16 %v944, %v940
    %v1221 = vpack.c.b16 %v949, %v945
    %v1222 = vpack.c.b16 %v950, %v946
    %v1223 = vpack.c.b16 %v951, %v947
    %v1224 = vpack.c.b16 %v952, %v948
    %v1225 = vpack.c.b16 %v957, %v953
    %v1226 = vpack.c.b16 %v958, %v954
    %v1227 = vpack.c.b16 %v959, %v955
    %v1228 = vpack.c.b16 %v960, %v956
    %v1229 = vpack.c.b16 %v965, %v961
    %v1230 = vpack.c.b16 %v966, %v962
    %v1231 = vpack.c.b16 %v967, %v963
    %v1232 = vpack.c.b16 %v968, %v964
    %v1233 = vpack.c.b16 %v973, %v969
    %v1234 = vpack.c.b16 %v974, %v970
    %v1235 = vpack.c.b16 %v975, %v971
    %v1236 = vpack.c.b16 %v976, %v972
    %v1237 = vpack.c.b16 %v981, %v977
    %v1238 = vpack.c.b16 %v982, %v978
    %v1239 = vpack.c.b16 %v983, %v979
    %v1240 = vpack.c.b16 %v984, %v980
    %v1241 = vpack.c.b16 %v989, %v985
    %v1242 = vpack.c.b16 %v990, %v986
    %v1243 = vpack.c.b16 %v991, %v987
    %v1244 = vpack.c.b16 %v992, %v988
    %v1245 = vpack.c.b16 %v997, %v993
    %v1246 = vpack.c.b16 %v998, %v994
    %v1247 = vpack.c.b16 %v999, %v995
    %v1248 = vpack.c.b16 %v1000, %v996
    %v1249 = vpack.c.b16 %v1005, %v1001
    %v1250 = vpack.c.b16 %v1006, %v1002
    %v1251 = vpack.c.b16 %v1007, %v1003
    %v1252 = vpack.c.b16 %v1008, %v1004
    %v1253 = vpack.c.b16 %v1013, %v1009
    %v1254 = vpack.c.b16 %v1014, %v1010
    %v1255 = vpack.c.b16 %v1015, %v1011
    %v1256 = vpack.c.b16 %v1016, %v1012
    %v1257 = vpack.c.b16 %v1021, %v1017
    %v1258 = vpack.c.b16 %v1022, %v1018
    %v1259 = vpack.c.b16 %v1023, %v1019
    %v1260 = vpack.c.b16 %v1024, %v1020
    %v1261 = vpack.c.b16 %v1029, %v1025
    %v1262 = vpack.c.b16 %v1030, %v1026
    %v1263 = vpack.c.b16 %v1031, %v1027
    %v1264 = vpack.c.b16 %v1032, %v1028
    %v1265 = vpack.c.b16 %v1037, %v1033
    %v1266 = vpack.c.b16 %v1038, %v1034
    %v1267 = vpack.c.b16 %v1039, %v1035
    %v1268 = vpack.c.b16 %v1040, %v1036
    %v1269 = vpack.c.b16 %v1045, %v1041
    %v1270 = vpack.c.b16 %v1046, %v1042
    %v1271 = vpack.c.b16 %v1047, %v1043
    %v1272 = vpack.c.b16 %v1048, %v1044
    %1497 = vmatpush.bf16.msra.mxu0 %v1077
    %1498 = vmatpush.bf16.msra.mxu0 %v1073
    %1499 = vmatpush.bf16.msra.mxu0 %v1069
    %1500 = vmatpush.bf16.msra.mxu0 %v1065
    %1501 = vmatpush.bf16.msra.mxu0 %v1061
    %1502 = vmatpush.bf16.msra.mxu0 %v1057
    %1503 = vmatpush.bf16.msra.mxu0 %v1053
    %1504 = vmatpush.bf16.msra.mxu0 %v1049
    %1505 = vmatmul.bf16.gmra.mxu0 %v363
    %v1506 = vpop.f32.mrf.mxu0
    %v1507 = vadd.f32 %v333, %v1506
    %v1508 = vpop.f32.mrf.mxu0
    %v1509 = vadd.f32 %v333, %v1508
    %1510 = vdwg.mxu0
    %1511 = vmatpush.bf16.msra.mxu0 %v1109
    %1512 = vmatpush.bf16.msra.mxu0 %v1105
    %1513 = vmatpush.bf16.msra.mxu0 %v1101
    %1514 = vmatpush.bf16.msra.mxu0 %v1097
    %1515 = vmatpush.bf16.msra.mxu0 %v1093
    %1516 = vmatpush.bf16.msra.mxu0 %v1089
    %1517 = vmatpush.bf16.msra.mxu0 %v1085
    %1518 = vmatpush.bf16.msra.mxu0 %v1081
    %1519 = vmatmul.bf16.gmra.mxu0 %v364
    %v1520 = vpop.f32.mrf.mxu0
    %v1521 = vadd.f32 %v1507, %v1520
    %v1522 = vpop.f32.mrf.mxu0
    %v1523 = vadd.f32 %v1509, %v1522
    %1524 = vdwg.mxu0
    %1525 = vmatpush.bf16.msra.mxu0 %v1141
    %1526 = vmatpush.bf16.msra.mxu0 %v1137
    %1527 = vmatpush.bf16.msra.mxu0 %v1133
    %1528 = vmatpush.bf16.msra.mxu0 %v1129
    %1529 = vmatpush.bf16.msra.mxu0 %v1125
    %1530 = vmatpush.bf16.msra.mxu0 %v1121
    %1531 = vmatpush.bf16.msra.mxu0 %v1117
    %1532 = vmatpush.bf16.msra.mxu0 %v1113
    %1533 = vmatmul.bf16.gmra.mxu0 %v365
    %v1534 = vpop.f32.mrf.mxu0
    %v1535 = vadd.f32 %v1521, %v1534
    %v1536 = vpop.f32.mrf.mxu0
    %v1537 = vadd.f32 %v1523, %v1536
    %1538 = vdwg.mxu0
    %1539 = vmatpush.bf16.msra.mxu0 %v1173
    %1540 = vmatpush.bf16.msra.mxu0 %v1169
    %1541 = vmatpush.bf16.msra.mxu0 %v1165
    %1542 = vmatpush.bf16.msra.mxu0 %v1161
    %1543 = vmatpush.bf16.msra.mxu0 %v1157
    %1544 = vmatpush.bf16.msra.mxu0 %v1153
    %1545 = vmatpush.bf16.msra.mxu0 %v1149
    %1546 = vmatpush.bf16.msra.mxu0 %v1145
    %1547 = vmatmul.bf16.gmra.mxu0 %v366
    %v1548 = vpop.f32.mrf.mxu0
    %v1549 = vadd.f32 %v1535, %v1548
    %v1550 = vpop.f32.mrf.mxu0
    %v1551 = vadd.f32 %v1537, %v1550
    %1552 = vdwg.mxu0
    %1553 = vmatpush.bf16.msra.mxu0 %v1205
    %1554 = vmatpush.bf16.msra.mxu0 %v1201
    %1555 = vmatpush.bf16.msra.mxu0 %v1197
    %1556 = vmatpush.bf16.msra.mxu0 %v1193
    %1557 = vmatpush.bf16.msra.mxu0 %v1189
    %1558 = vmatpush.bf16.msra.mxu0 %v1185
    %1559 = vmatpush.bf16.msra.mxu0 %v1181
    %1560 = vmatpush.bf16.msra.mxu0 %v1177
    %1561 = vmatmul.bf16.gmra.mxu0 %v367
    %v1562 = vpop.f32.mrf.mxu0
    %v1563 = vadd.f32 %v1549, %v1562
    %v1564 = vpop.f32.mrf.mxu0
    %v1565 = vadd.f32 %v1551, %v1564
    %1566 = vdwg.mxu0
    %1567 = vmatpush.bf16.msra.mxu0 %v1237
    %1568 = vmatpush.bf16.msra.mxu0 %v1233
    %1569 = vmatpush.bf16.msra.mxu0 %v1229
    %1570 = vmatpush.bf16.msra.mxu0 %v1225
    %1571 = vmatpush.bf16.msra.mxu0 %v1221
    %1572 = vmatpush.bf16.msra.mxu0 %v1217
    %1573 = vmatpush.bf16.msra.mxu0 %v1213
    %1574 = vmatpush.bf16.msra.mxu0 %v1209
    %1575 = vmatmul.bf16.gmra.mxu0 %v368
    %v1576 = vpop.f32.mrf.mxu0
    %v1577 = vadd.f32 %v1563, %v1576
    %v1578 = vpop.f32.mrf.mxu0
    %v1579 = vadd.f32 %v1565, %v1578
    %1580 = vdwg.mxu0
    %1581 = vmatpush.bf16.msra.mxu0 %v1269
    %1582 = vmatpush.bf16.msra.mxu0 %v1265
    %1583 = vmatpush.bf16.msra.mxu0 %v1261
    %1584 = vmatpush.bf16.msra.mxu0 %v1257
    %1585 = vmatpush.bf16.msra.mxu0 %v1253
    %1586 = vmatpush.bf16.msra.mxu0 %v1249
    %1587 = vmatpush.bf16.msra.mxu0 %v1245
    %1588 = vmatpush.bf16.msra.mxu0 %v1241
    %1589 = vmatmul.bf16.gmra.mxu0 %v369
    %v1590 = vpop.f32.mrf.mxu0
    %v1591 = vadd.f32 %v1577, %v1590
    %v1592 = vpop.f32.mrf.mxu0
    %v1593 = vadd.f32 %v1579, %v1592
    %1594 = vdwg.mxu0
    %1595 = vmatpush.bf16.msra.mxu0 %v1078
    %1596 = vmatpush.bf16.msra.mxu0 %v1074
    %1597 = vmatpush.bf16.msra.mxu0 %v1070
    %1598 = vmatpush.bf16.msra.mxu0 %v1066
    %1599 = vmatpush.bf16.msra.mxu0 %v1062
    %1600 = vmatpush.bf16.msra.mxu0 %v1058
    %1601 = vmatpush.bf16.msra.mxu0 %v1054
    %1602 = vmatpush.bf16.msra.mxu0 %v1050
    %1603 = vmatmul.bf16.gmra.mxu0 %v363
    %v1604 = vpop.f32.mrf.mxu0
    %v1605 = vadd.f32 %v334, %v1604
    %v1606 = vpop.f32.mrf.mxu0
    %v1607 = vadd.f32 %v334, %v1606
    %1608 = vdwg.mxu0
    %1609 = vmatpush.bf16.msra.mxu0 %v1110
    %1610 = vmatpush.bf16.msra.mxu0 %v1106
    %1611 = vmatpush.bf16.msra.mxu0 %v1102
    %1612 = vmatpush.bf16.msra.mxu0 %v1098
    %1613 = vmatpush.bf16.msra.mxu0 %v1094
    %1614 = vmatpush.bf16.msra.mxu0 %v1090
    %1615 = vmatpush.bf16.msra.mxu0 %v1086
    %1616 = vmatpush.bf16.msra.mxu0 %v1082
    %1617 = vmatmul.bf16.gmra.mxu0 %v364
    %v1618 = vpop.f32.mrf.mxu0
    %v1619 = vadd.f32 %v1605, %v1618
    %v1620 = vpop.f32.mrf.mxu0
    %v1621 = vadd.f32 %v1607, %v1620
    %1622 = vdwg.mxu0
    %1623 = vmatpush.bf16.msra.mxu0 %v1142
    %1624 = vmatpush.bf16.msra.mxu0 %v1138
    %1625 = vmatpush.bf16.msra.mxu0 %v1134
    %1626 = vmatpush.bf16.msra.mxu0 %v1130
    %1627 = vmatpush.bf16.msra.mxu0 %v1126
    %1628 = vmatpush.bf16.msra.mxu0 %v1122
    %1629 = vmatpush.bf16.msra.mxu0 %v1118
    %1630 = vmatpush.bf16.msra.mxu0 %v1114
    %1631 = vmatmul.bf16.gmra.mxu0 %v365
    %v1632 = vpop.f32.mrf.mxu0
    %v1633 = vadd.f32 %v1619, %v1632
    %v1634 = vpop.f32.mrf.mxu0
    %v1635 = vadd.f32 %v1621, %v1634
    %1636 = vdwg.mxu0
    %1637 = vmatpush.bf16.msra.mxu0 %v1174
    %1638 = vmatpush.bf16.msra.mxu0 %v1170
    %1639 = vmatpush.bf16.msra.mxu0 %v1166
    %1640 = vmatpush.bf16.msra.mxu0 %v1162
    %1641 = vmatpush.bf16.msra.mxu0 %v1158
    %1642 = vmatpush.bf16.msra.mxu0 %v1154
    %1643 = vmatpush.bf16.msra.mxu0 %v1150
    %1644 = vmatpush.bf16.msra.mxu0 %v1146
    %1645 = vmatmul.bf16.gmra.mxu0 %v366
    %v1646 = vpop.f32.mrf.mxu0
    %v1647 = vadd.f32 %v1633, %v1646
    %v1648 = vpop.f32.mrf.mxu0
    %v1649 = vadd.f32 %v1635, %v1648
    %1650 = vdwg.mxu0
    %1651 = vmatpush.bf16.msra.mxu0 %v1206
    %1652 = vmatpush.bf16.msra.mxu0 %v1202
    %1653 = vmatpush.bf16.msra.mxu0 %v1198
    %1654 = vmatpush.bf16.msra.mxu0 %v1194
    %1655 = vmatpush.bf16.msra.mxu0 %v1190
    %1656 = vmatpush.bf16.msra.mxu0 %v1186
    %1657 = vmatpush.bf16.msra.mxu0 %v1182
    %1658 = vmatpush.bf16.msra.mxu0 %v1178
    %1659 = vmatmul.bf16.gmra.mxu0 %v367
    %v1660 = vpop.f32.mrf.mxu0
    %v1661 = vadd.f32 %v1647, %v1660
    %v1662 = vpop.f32.mrf.mxu0
    %v1663 = vadd.f32 %v1649, %v1662
    %1664 = vdwg.mxu0
    %1665 = vmatpush.bf16.msra.mxu0 %v1238
    %1666 = vmatpush.bf16.msra.mxu0 %v1234
    %1667 = vmatpush.bf16.msra.mxu0 %v1230
    %1668 = vmatpush.bf16.msra.mxu0 %v1226
    %1669 = vmatpush.bf16.msra.mxu0 %v1222
    %1670 = vmatpush.bf16.msra.mxu0 %v1218
    %1671 = vmatpush.bf16.msra.mxu0 %v1214
    %1672 = vmatpush.bf16.msra.mxu0 %v1210
    %1673 = vmatmul.bf16.gmra.mxu0 %v368
    %v1674 = vpop.f32.mrf.mxu0
    %v1675 = vadd.f32 %v1661, %v1674
    %v1676 = vpop.f32.mrf.mxu0
    %v1677 = vadd.f32 %v1663, %v1676
    %1678 = vdwg.mxu0
    %1679 = vmatpush.bf16.msra.mxu0 %v1270
    %1680 = vmatpush.bf16.msra.mxu0 %v1266
    %1681 = vmatpush.bf16.msra.mxu0 %v1262
    %1682 = vmatpush.bf16.msra.mxu0 %v1258
    %1683 = vmatpush.bf16.msra.mxu0 %v1254
    %1684 = vmatpush.bf16.msra.mxu0 %v1250
    %1685 = vmatpush.bf16.msra.mxu0 %v1246
    %1686 = vmatpush.bf16.msra.mxu0 %v1242
    %1687 = vmatmul.bf16.gmra.mxu0 %v369
    %v1688 = vpop.f32.mrf.mxu0
    %v1689 = vadd.f32 %v1675, %v1688
    %v1690 = vpop.f32.mrf.mxu0
    %v1691 = vadd.f32 %v1677, %v1690
    %1692 = vdwg.mxu0
    %1693 = vmatpush.bf16.msra.mxu0 %v1079
    %1694 = vmatpush.bf16.msra.mxu0 %v1075
    %1695 = vmatpush.bf16.msra.mxu0 %v1071
    %1696 = vmatpush.bf16.msra.mxu0 %v1067
    %1697 = vmatpush.bf16.msra.mxu0 %v1063
    %1698 = vmatpush.bf16.msra.mxu0 %v1059
    %1699 = vmatpush.bf16.msra.mxu0 %v1055
    %1700 = vmatpush.bf16.msra.mxu0 %v1051
    %1701 = vmatmul.bf16.gmra.mxu0 %v363
    %v1702 = vpop.f32.mrf.mxu0
    %v1703 = vadd.f32 %v335, %v1702
    %v1704 = vpop.f32.mrf.mxu0
    %v1705 = vadd.f32 %v335, %v1704
    %1706 = vdwg.mxu0
    %1707 = vmatpush.bf16.msra.mxu0 %v1111
    %1708 = vmatpush.bf16.msra.mxu0 %v1107
    %1709 = vmatpush.bf16.msra.mxu0 %v1103
    %1710 = vmatpush.bf16.msra.mxu0 %v1099
    %1711 = vmatpush.bf16.msra.mxu0 %v1095
    %1712 = vmatpush.bf16.msra.mxu0 %v1091
    %1713 = vmatpush.bf16.msra.mxu0 %v1087
    %1714 = vmatpush.bf16.msra.mxu0 %v1083
    %1715 = vmatmul.bf16.gmra.mxu0 %v364
    %v1716 = vpop.f32.mrf.mxu0
    %v1717 = vadd.f32 %v1703, %v1716
    %v1718 = vpop.f32.mrf.mxu0
    %v1719 = vadd.f32 %v1705, %v1718
    %1720 = vdwg.mxu0
    %1721 = vmatpush.bf16.msra.mxu0 %v1143
    %1722 = vmatpush.bf16.msra.mxu0 %v1139
    %1723 = vmatpush.bf16.msra.mxu0 %v1135
    %1724 = vmatpush.bf16.msra.mxu0 %v1131
    %1725 = vmatpush.bf16.msra.mxu0 %v1127
    %1726 = vmatpush.bf16.msra.mxu0 %v1123
    %1727 = vmatpush.bf16.msra.mxu0 %v1119
    %1728 = vmatpush.bf16.msra.mxu0 %v1115
    %1729 = vmatmul.bf16.gmra.mxu0 %v365
    %v1730 = vpop.f32.mrf.mxu0
    %v1731 = vadd.f32 %v1717, %v1730
    %v1732 = vpop.f32.mrf.mxu0
    %v1733 = vadd.f32 %v1719, %v1732
    %1734 = vdwg.mxu0
    %1735 = vmatpush.bf16.msra.mxu0 %v1175
    %1736 = vmatpush.bf16.msra.mxu0 %v1171
    %1737 = vmatpush.bf16.msra.mxu0 %v1167
    %1738 = vmatpush.bf16.msra.mxu0 %v1163
    %1739 = vmatpush.bf16.msra.mxu0 %v1159
    %1740 = vmatpush.bf16.msra.mxu0 %v1155
    %1741 = vmatpush.bf16.msra.mxu0 %v1151
    %1742 = vmatpush.bf16.msra.mxu0 %v1147
    %1743 = vmatmul.bf16.gmra.mxu0 %v366
    %v1744 = vpop.f32.mrf.mxu0
    %v1745 = vadd.f32 %v1731, %v1744
    %v1746 = vpop.f32.mrf.mxu0
    %v1747 = vadd.f32 %v1733, %v1746
    %1748 = vdwg.mxu0
    %1749 = vmatpush.bf16.msra.mxu0 %v1207
    %1750 = vmatpush.bf16.msra.mxu0 %v1203
    %1751 = vmatpush.bf16.msra.mxu0 %v1199
    %1752 = vmatpush.bf16.msra.mxu0 %v1195
    %1753 = vmatpush.bf16.msra.mxu0 %v1191
    %1754 = vmatpush.bf16.msra.mxu0 %v1187
    %1755 = vmatpush.bf16.msra.mxu0 %v1183
    %1756 = vmatpush.bf16.msra.mxu0 %v1179
    %1757 = vmatmul.bf16.gmra.mxu0 %v367
    %v1758 = vpop.f32.mrf.mxu0
    %v1759 = vadd.f32 %v1745, %v1758
    %v1760 = vpop.f32.mrf.mxu0
    %v1761 = vadd.f32 %v1747, %v1760
    %1762 = vdwg.mxu0
    %1763 = vmatpush.bf16.msra.mxu0 %v1239
    %1764 = vmatpush.bf16.msra.mxu0 %v1235
    %1765 = vmatpush.bf16.msra.mxu0 %v1231
    %1766 = vmatpush.bf16.msra.mxu0 %v1227
    %1767 = vmatpush.bf16.msra.mxu0 %v1223
    %1768 = vmatpush.bf16.msra.mxu0 %v1219
    %1769 = vmatpush.bf16.msra.mxu0 %v1215
    %1770 = vmatpush.bf16.msra.mxu0 %v1211
    %1771 = vmatmul.bf16.gmra.mxu0 %v368
    %v1772 = vpop.f32.mrf.mxu0
    %v1773 = vadd.f32 %v1759, %v1772
    %v1774 = vpop.f32.mrf.mxu0
    %v1775 = vadd.f32 %v1761, %v1774
    %1776 = vdwg.mxu0
    %1777 = vmatpush.bf16.msra.mxu0 %v1271
    %1778 = vmatpush.bf16.msra.mxu0 %v1267
    %1779 = vmatpush.bf16.msra.mxu0 %v1263
    %1780 = vmatpush.bf16.msra.mxu0 %v1259
    %1781 = vmatpush.bf16.msra.mxu0 %v1255
    %1782 = vmatpush.bf16.msra.mxu0 %v1251
    %1783 = vmatpush.bf16.msra.mxu0 %v1247
    %1784 = vmatpush.bf16.msra.mxu0 %v1243
    %1785 = vmatmul.bf16.gmra.mxu0 %v369
    %v1786 = vpop.f32.mrf.mxu0
    %v1787 = vadd.f32 %v1773, %v1786
    %v1788 = vpop.f32.mrf.mxu0
    %v1789 = vadd.f32 %v1775, %v1788
    %1790 = vdwg.mxu0
    %1791 = vmatpush.bf16.msra.mxu0 %v1080
    %1792 = vmatpush.bf16.msra.mxu0 %v1076
    %1793 = vmatpush.bf16.msra.mxu0 %v1072
    %1794 = vmatpush.bf16.msra.mxu0 %v1068
    %1795 = vmatpush.bf16.msra.mxu0 %v1064
    %1796 = vmatpush.bf16.msra.mxu0 %v1060
    %1797 = vmatpush.bf16.msra.mxu0 %v1056
    %1798 = vmatpush.bf16.msra.mxu0 %v1052
    %1799 = vmatmul.bf16.gmra.mxu0 %v363
    %v1800 = vpop.f32.mrf.mxu0
    %v1801 = vadd.f32 %v336, %v1800
    %v1802 = vpop.f32.mrf.mxu0
    %v1803 = vadd.f32 %v336, %v1802
    %1804 = vdwg.mxu0
    %1805 = vmatpush.bf16.msra.mxu0 %v1112
    %1806 = vmatpush.bf16.msra.mxu0 %v1108
    %1807 = vmatpush.bf16.msra.mxu0 %v1104
    %1808 = vmatpush.bf16.msra.mxu0 %v1100
    %1809 = vmatpush.bf16.msra.mxu0 %v1096
    %1810 = vmatpush.bf16.msra.mxu0 %v1092
    %1811 = vmatpush.bf16.msra.mxu0 %v1088
    %1812 = vmatpush.bf16.msra.mxu0 %v1084
    %1813 = vmatmul.bf16.gmra.mxu0 %v364
    %v1814 = vpop.f32.mrf.mxu0
    %v1815 = vadd.f32 %v1801, %v1814
    %v1816 = vpop.f32.mrf.mxu0
    %v1817 = vadd.f32 %v1803, %v1816
    %1818 = vdwg.mxu0
    %1819 = vmatpush.bf16.msra.mxu0 %v1144
    %1820 = vmatpush.bf16.msra.mxu0 %v1140
    %1821 = vmatpush.bf16.msra.mxu0 %v1136
    %1822 = vmatpush.bf16.msra.mxu0 %v1132
    %1823 = vmatpush.bf16.msra.mxu0 %v1128
    %1824 = vmatpush.bf16.msra.mxu0 %v1124
    %1825 = vmatpush.bf16.msra.mxu0 %v1120
    %1826 = vmatpush.bf16.msra.mxu0 %v1116
    %1827 = vmatmul.bf16.gmra.mxu0 %v365
    %v1828 = vpop.f32.mrf.mxu0
    %v1829 = vadd.f32 %v1815, %v1828
    %v1830 = vpop.f32.mrf.mxu0
    %v1831 = vadd.f32 %v1817, %v1830
    %1832 = vdwg.mxu0
    %1833 = vmatpush.bf16.msra.mxu0 %v1176
    %1834 = vmatpush.bf16.msra.mxu0 %v1172
    %1835 = vmatpush.bf16.msra.mxu0 %v1168
    %1836 = vmatpush.bf16.msra.mxu0 %v1164
    %1837 = vmatpush.bf16.msra.mxu0 %v1160
    %1838 = vmatpush.bf16.msra.mxu0 %v1156
    %1839 = vmatpush.bf16.msra.mxu0 %v1152
    %1840 = vmatpush.bf16.msra.mxu0 %v1148
    %1841 = vmatmul.bf16.gmra.mxu0 %v366
    %v1842 = vpop.f32.mrf.mxu0
    %v1843 = vadd.f32 %v1829, %v1842
    %v1844 = vpop.f32.mrf.mxu0
    %v1845 = vadd.f32 %v1831, %v1844
    %1846 = vdwg.mxu0
    %1847 = vmatpush.bf16.msra.mxu0 %v1208
    %1848 = vmatpush.bf16.msra.mxu0 %v1204
    %1849 = vmatpush.bf16.msra.mxu0 %v1200
    %1850 = vmatpush.bf16.msra.mxu0 %v1196
    %1851 = vmatpush.bf16.msra.mxu0 %v1192
    %1852 = vmatpush.bf16.msra.mxu0 %v1188
    %1853 = vmatpush.bf16.msra.mxu0 %v1184
    %1854 = vmatpush.bf16.msra.mxu0 %v1180
    %1855 = vmatmul.bf16.gmra.mxu0 %v367
    %v1856 = vpop.f32.mrf.mxu0
    %v1857 = vadd.f32 %v1843, %v1856
    %v1858 = vpop.f32.mrf.mxu0
    %v1859 = vadd.f32 %v1845, %v1858
    %1860 = vdwg.mxu0
    %1861 = vmatpush.bf16.msra.mxu0 %v1240
    %1862 = vmatpush.bf16.msra.mxu0 %v1236
    %1863 = vmatpush.bf16.msra.mxu0 %v1232
    %1864 = vmatpush.bf16.msra.mxu0 %v1228
    %1865 = vmatpush.bf16.msra.mxu0 %v1224
    %1866 = vmatpush.bf16.msra.mxu0 %v1220
    %1867 = vmatpush.bf16.msra.mxu0 %v1216
    %1868 = vmatpush.bf16.msra.mxu0 %v1212
    %1869 = vmatmul.bf16.gmra.mxu0 %v368
    %v1870 = vpop.f32.mrf.mxu0
    %v1871 = vadd.f32 %v1857, %v1870
    %v1872 = vpop.f32.mrf.mxu0
    %v1873 = vadd.f32 %v1859, %v1872
    %1874 = vdwg.mxu0
    %1875 = vmatpush.bf16.msra.mxu0 %v1272
    %1876 = vmatpush.bf16.msra.mxu0 %v1268
    %1877 = vmatpush.bf16.msra.mxu0 %v1264
    %1878 = vmatpush.bf16.msra.mxu0 %v1260
    %1879 = vmatpush.bf16.msra.mxu0 %v1256
    %1880 = vmatpush.bf16.msra.mxu0 %v1252
    %1881 = vmatpush.bf16.msra.mxu0 %v1248
    %1882 = vmatpush.bf16.msra.mxu0 %v1244
    %1883 = vmatmul.bf16.gmra.mxu0 %v369
    %v1884 = vpop.f32.mrf.mxu0
    %v1885 = vadd.f32 %v1871, %v1884
    %v1886 = vpop.f32.mrf.mxu0
    %v1887 = vadd.f32 %v1873, %v1886
    %1888 = vdwg.mxu0
    %v1889 = vmax.f32 %v1591, 0.0
    %v1890 = vmax.f32 %v1689, 0.0
    %v1891 = vmax.f32 %v1787, 0.0
    %v1892 = vmax.f32 %v1885, 0.0
    %v1893 = vmax.f32 %v1593, 0.0
    %v1894 = vmax.f32 %v1691, 0.0
    %v1895 = vmax.f32 %v1789, 0.0
    %v1896 = vmax.f32 %v1887, 0.0
    %v1897 = vpack.c.bf16 %v1893, %v1889
    %v1898 = vpack.c.bf16 %v1894, %v1890
    %v1899 = vpack.c.bf16 %v1895, %v1891
    %v1900 = vpack.c.bf16 %v1896, %v1892
    %v1901 = vld [vmem:[#allocation6] sm:$0xff]
    %v1902 = vld [vmem:[#allocation6 + $0x8] sm:$0xff]
    %v1903 = vld [vmem:[#allocation6 + $0x10] sm:$0xff]
    %v1904 = vld [vmem:[#allocation6 + $0x18] sm:$0xff]
    %v1905 = vld [vmem:[#allocation6 + $0x20] sm:$0xff]
    %v1906 = vld [vmem:[#allocation6 + $0x28] sm:$0xff]
    %v1907 = vld [vmem:[#allocation6 + $0x30] sm:$0xff]
    %v1908 = vld [vmem:[#allocation6 + $0x38] sm:$0xff]
    %v1909 = vld [vmem:[#allocation6 + $0x40] sm:$0xff]
    %v1910 = vld [vmem:[#allocation6 + $0x48] sm:$0xff]
    %v1911 = vld [vmem:[#allocation6 + $0x50] sm:$0xff]
    %v1912 = vld [vmem:[#allocation6 + $0x58] sm:$0xff]
    %v1913 = vld [vmem:[#allocation6 + $0x60] sm:$0xff]
    %v1914 = vld [vmem:[#allocation6 + $0x68] sm:$0xff]
    %v1915 = vld [vmem:[#allocation6 + $0x70] sm:$0xff]
    %v1916 = vld [vmem:[#allocation6 + $0x78] sm:$0xff]
    %v1917 = vld [vmem:[#allocation6 + $0x80] sm:$0xff]
    %v1918 = vld [vmem:[#allocation6 + $0x88] sm:$0xff]
    %v1919 = vld [vmem:[#allocation6 + $0x90] sm:$0xff]
    %v1920 = vld [vmem:[#allocation6 + $0x98] sm:$0xff]
    %v1921 = vld [vmem:[#allocation6 + $0xa0] sm:$0xff]
    %v1922 = vld [vmem:[#allocation6 + $0xa8] sm:$0xff]
    %v1923 = vld [vmem:[#allocation6 + $0xb0] sm:$0xff]
    %v1924 = vld [vmem:[#allocation6 + $0xb8] sm:$0xff]
    %v1925 = vld [vmem:[#allocation6 + $0xc0] sm:$0xff]
    %v1926 = vld [vmem:[#allocation6 + $0xc8] sm:$0xff]
    %v1927 = vld [vmem:[#allocation6 + $0xd0] sm:$0xff]
    %v1928 = vld [vmem:[#allocation6 + $0xd8] sm:$0xff]
    %v1929 = vld [vmem:[#allocation6 + $0xe0] sm:$0xff]
    %v1930 = vld [vmem:[#allocation6 + $0xe8] sm:$0xff]
    %v1931 = vld [vmem:[#allocation6 + $0xf0] sm:$0xff]
    %v1932 = vld [vmem:[#allocation6 + $0xf8] sm:$0xff]
    %v1933 = vld [vmem:[#allocation6 + $0x100] sm:$0xff]
    %v1934 = vld [vmem:[#allocation6 + $0x108] sm:$0xff]
    %v1935 = vld [vmem:[#allocation6 + $0x110] sm:$0xff]
    %v1936 = vld [vmem:[#allocation6 + $0x118] sm:$0xff]
    %v1937 = vld [vmem:[#allocation6 + $0x120] sm:$0xff]
    %v1938 = vld [vmem:[#allocation6 + $0x128] sm:$0xff]
    %v1939 = vld [vmem:[#allocation6 + $0x130] sm:$0xff]
    %v1940 = vld [vmem:[#allocation6 + $0x138] sm:$0xff]
    %v1941 = vld [vmem:[#allocation6 + $0x140] sm:$0xff]
    %v1942 = vld [vmem:[#allocation6 + $0x148] sm:$0xff]
    %v1943 = vld [vmem:[#allocation6 + $0x150] sm:$0xff]
    %v1944 = vld [vmem:[#allocation6 + $0x158] sm:$0xff]
    %v1945 = vld [vmem:[#allocation6 + $0x160] sm:$0xff]
    %v1946 = vld [vmem:[#allocation6 + $0x168] sm:$0xff]
    %v1947 = vld [vmem:[#allocation6 + $0x170] sm:$0xff]
    %v1948 = vld [vmem:[#allocation6 + $0x178] sm:$0xff]
    %v1949 = vld [vmem:[#allocation6 + $0x180] sm:$0xff]
    %v1950 = vld [vmem:[#allocation6 + $0x188] sm:$0xff]
    %v1951 = vld [vmem:[#allocation6 + $0x190] sm:$0xff]
    %v1952 = vld [vmem:[#allocation6 + $0x198] sm:$0xff]
    %v1953 = vld [vmem:[#allocation6 + $0x1a0] sm:$0xff]
    %v1954 = vld [vmem:[#allocation6 + $0x1a8] sm:$0xff]
    %v1955 = vld [vmem:[#allocation6 + $0x1b0] sm:$0xff]
    %v1956 = vld [vmem:[#allocation6 + $0x1b8] sm:$0xff]
    %v1957 = vld [vmem:[#allocation6 + $0x1c0] sm:$0xff]
    %v1958 = vld [vmem:[#allocation6 + $0x1c8] sm:$0xff]
    %v1959 = vld [vmem:[#allocation6 + $0x1d0] sm:$0xff]
    %v1960 = vld [vmem:[#allocation6 + $0x1d8] sm:$0xff]
    %v1961 = vld [vmem:[#allocation6 + $0x1e0] sm:$0xff]
    %v1962 = vld [vmem:[#allocation6 + $0x1e8] sm:$0xff]
    %v1963 = vld [vmem:[#allocation6 + $0x1f0] sm:$0xff]
    %v1964 = vld [vmem:[#allocation6 + $0x1f8] sm:$0xff]
    %v1965 = vld [vmem:[%s4] sm:$0x3]
    %v1967 = vperm.slane %v1965, 0
    %v1968 = vperm.slane %v1965, 1
    %v2035 = vunpack.c.l.b16 %v1901
    %v2036 = vunpack.c.h.b16 %v1901
    %v2037 = vunpack.c.l.b16 %v1902
    %v2038 = vunpack.c.h.b16 %v1902
    %v2039 = vunpack.c.l.b16 %v1903
    %v2040 = vunpack.c.h.b16 %v1903
    %v2041 = vunpack.c.l.b16 %v1904
    %v2042 = vunpack.c.h.b16 %v1904
    %v2043 = vunpack.c.l.b16 %v1905
    %v2044 = vunpack.c.h.b16 %v1905
    %v2045 = vunpack.c.l.b16 %v1906
    %v2046 = vunpack.c.h.b16 %v1906
    %v2047 = vunpack.c.l.b16 %v1907
    %v2048 = vunpack.c.h.b16 %v1907
    %v2049 = vunpack.c.l.b16 %v1908
    %v2050 = vunpack.c.h.b16 %v1908
    %v2051 = vunpack.c.l.b16 %v1909
    %v2052 = vunpack.c.h.b16 %v1909
    %v2053 = vunpack.c.l.b16 %v1910
    %v2054 = vunpack.c.h.b16 %v1910
    %v2055 = vunpack.c.l.b16 %v1911
    %v2056 = vunpack.c.h.b16 %v1911
    %v2057 = vunpack.c.l.b16 %v1912
    %v2058 = vunpack.c.h.b16 %v1912
    %v2059 = vunpack.c.l.b16 %v1913
    %v2060 = vunpack.c.h.b16 %v1913
    %v2061 = vunpack.c.l.b16 %v1914
    %v2062 = vunpack.c.h.b16 %v1914
    %v2063 = vunpack.c.l.b16 %v1915
    %v2064 = vunpack.c.h.b16 %v1915
    %v2065 = vunpack.c.l.b16 %v1916
    %v2066 = vunpack.c.h.b16 %v1916
    %v2067 = vunpack.c.l.b16 %v1917
    %v2068 = vunpack.c.h.b16 %v1917
    %v2069 = vunpack.c.l.b16 %v1918
    %v2070 = vunpack.c.h.b16 %v1918
    %v2071 = vunpack.c.l.b16 %v1919
    %v2072 = vunpack.c.h.b16 %v1919
    %v2073 = vunpack.c.l.b16 %v1920
    %v2074 = vunpack.c.h.b16 %v1920
    %v2075 = vunpack.c.l.b16 %v1921
    %v2076 = vunpack.c.h.b16 %v1921
    %v2077 = vunpack.c.l.b16 %v1922
    %v2078 = vunpack.c.h.b16 %v1922
    %v2079 = vunpack.c.l.b16 %v1923
    %v2080 = vunpack.c.h.b16 %v1923
    %v2081 = vunpack.c.l.b16 %v1924
    %v2082 = vunpack.c.h.b16 %v1924
    %v2083 = vunpack.c.l.b16 %v1925
    %v2084 = vunpack.c.h.b16 %v1925
    %v2085 = vunpack.c.l.b16 %v1926
    %v2086 = vunpack.c.h.b16 %v1926
    %v2087 = vunpack.c.l.b16 %v1927
    %v2088 = vunpack.c.h.b16 %v1927
    %v2089 = vunpack.c.l.b16 %v1928
    %v2090 = vunpack.c.h.b16 %v1928
    %v2091 = vunpack.c.l.b16 %v1929
    %v2092 = vunpack.c.h.b16 %v1929
    %v2093 = vunpack.c.l.b16 %v1930
    %v2094 = vunpack.c.h.b16 %v1930
    %v2095 = vunpack.c.l.b16 %v1931
    %v2096 = vunpack.c.h.b16 %v1931
    %v2097 = vunpack.c.l.b16 %v1932
    %v2098 = vunpack.c.h.b16 %v1932
    %v2099 = vunpack.c.l.b16 %v1933
    %v2100 = vunpack.c.h.b16 %v1933
    %v2101 = vunpack.c.l.b16 %v1934
    %v2102 = vunpack.c.h.b16 %v1934
    %v2103 = vunpack.c.l.b16 %v1935
    %v2104 = vunpack.c.h.b16 %v1935
    %v2105 = vunpack.c.l.b16 %v1936
    %v2106 = vunpack.c.h.b16 %v1936
    %v2107 = vunpack.c.l.b16 %v1937
    %v2108 = vunpack.c.h.b16 %v1937
    %v2109 = vunpack.c.l.b16 %v1938
    %v2110 = vunpack.c.h.b16 %v1938
    %v2111 = vunpack.c.l.b16 %v1939
    %v2112 = vunpack.c.h.b16 %v1939
    %v2113 = vunpack.c.l.b16 %v1940
    %v2114 = vunpack.c.h.b16 %v1940
    %v2115 = vunpack.c.l.b16 %v1941
    %v2116 = vunpack.c.h.b16 %v1941
    %v2117 = vunpack.c.l.b16 %v1942
    %v2118 = vunpack.c.h.b16 %v1942
    %v2119 = vunpack.c.l.b16 %v1943
    %v2120 = vunpack.c.h.b16 %v1943
    %v2121 = vunpack.c.l.b16 %v1944
    %v2122 = vunpack.c.h.b16 %v1944
    %v2123 = vunpack.c.l.b16 %v1945
    %v2124 = vunpack.c.h.b16 %v1945
    %v2125 = vunpack.c.l.b16 %v1946
    %v2126 = vunpack.c.h.b16 %v1946
    %v2127 = vunpack.c.l.b16 %v1947
    %v2128 = vunpack.c.h.b16 %v1947
    %v2129 = vunpack.c.l.b16 %v1948
    %v2130 = vunpack.c.h.b16 %v1948
    %v2131 = vunpack.c.l.b16 %v1949
    %v2132 = vunpack.c.h.b16 %v1949
    %v2133 = vunpack.c.l.b16 %v1950
    %v2134 = vunpack.c.h.b16 %v1950
    %v2135 = vunpack.c.l.b16 %v1951
    %v2136 = vunpack.c.h.b16 %v1951
    %v2137 = vunpack.c.l.b16 %v1952
    %v2138 = vunpack.c.h.b16 %v1952
    %v2139 = vunpack.c.l.b16 %v1953
    %v2140 = vunpack.c.h.b16 %v1953
    %v2141 = vunpack.c.l.b16 %v1954
    %v2142 = vunpack.c.h.b16 %v1954
    %v2143 = vunpack.c.l.b16 %v1955
    %v2144 = vunpack.c.h.b16 %v1955
    %v2145 = vunpack.c.l.b16 %v1956
    %v2146 = vunpack.c.h.b16 %v1956
    %v2147 = vunpack.c.l.b16 %v1957
    %v2148 = vunpack.c.h.b16 %v1957
    %v2149 = vunpack.c.l.b16 %v1958
    %v2150 = vunpack.c.h.b16 %v1958
    %v2151 = vunpack.c.l.b16 %v1959
    %v2152 = vunpack.c.h.b16 %v1959
    %v2153 = vunpack.c.l.b16 %v1960
    %v2154 = vunpack.c.h.b16 %v1960
    %v2155 = vunpack.c.l.b16 %v1961
    %v2156 = vunpack.c.h.b16 %v1961
    %v2157 = vunpack.c.l.b16 %v1962
    %v2158 = vunpack.c.h.b16 %v1962
    %v2159 = vunpack.c.l.b16 %v1963
    %v2160 = vunpack.c.h.b16 %v1963
    %v2161 = vunpack.c.l.b16 %v1964
    %v2162 = vunpack.c.h.b16 %v1964
    %v2163 = vpack.c.b16 %v2037, %v2035
    %v2164 = vpack.c.b16 %v2038, %v2036
    %v2165 = vpack.c.b16 %v2041, %v2039
    %v2166 = vpack.c.b16 %v2042, %v2040
    %v2167 = vpack.c.b16 %v2045, %v2043
    %v2168 = vpack.c.b16 %v2046, %v2044
    %v2169 = vpack.c.b16 %v2049, %v2047
    %v2170 = vpack.c.b16 %v2050, %v2048
    %v2171 = vpack.c.b16 %v2053, %v2051
    %v2172 = vpack.c.b16 %v2054, %v2052
    %v2173 = vpack.c.b16 %v2057, %v2055
    %v2174 = vpack.c.b16 %v2058, %v2056
    %v2175 = vpack.c.b16 %v2061, %v2059
    %v2176 = vpack.c.b16 %v2062, %v2060
    %v2177 = vpack.c.b16 %v2065, %v2063
    %v2178 = vpack.c.b16 %v2066, %v2064
    %v2179 = vpack.c.b16 %v2069, %v2067
    %v2180 = vpack.c.b16 %v2070, %v2068
    %v2181 = vpack.c.b16 %v2073, %v2071
    %v2182 = vpack.c.b16 %v2074, %v2072
    %v2183 = vpack.c.b16 %v2077, %v2075
    %v2184 = vpack.c.b16 %v2078, %v2076
    %v2185 = vpack.c.b16 %v2081, %v2079
    %v2186 = vpack.c.b16 %v2082, %v2080
    %v2187 = vpack.c.b16 %v2085, %v2083
    %v2188 = vpack.c.b16 %v2086, %v2084
    %v2189 = vpack.c.b16 %v2089, %v2087
    %v2190 = vpack.c.b16 %v2090, %v2088
    %v2191 = vpack.c.b16 %v2093, %v2091
    %v2192 = vpack.c.b16 %v2094, %v2092
    %v2193 = vpack.c.b16 %v2097, %v2095
    %v2194 = vpack.c.b16 %v2098, %v2096
    %v2195 = vpack.c.b16 %v2101, %v2099
    %v2196 = vpack.c.b16 %v2102, %v2100
    %v2197 = vpack.c.b16 %v2105, %v2103
    %v2198 = vpack.c.b16 %v2106, %v2104
    %v2199 = vpack.c.b16 %v2109, %v2107
    %v2200 = vpack.c.b16 %v2110, %v2108
    %v2201 = vpack.c.b16 %v2113, %v2111
    %v2202 = vpack.c.b16 %v2114, %v2112
    %v2203 = vpack.c.b16 %v2117, %v2115
    %v2204 = vpack.c.b16 %v2118, %v2116
    %v2205 = vpack.c.b16 %v2121, %v2119
    %v2206 = vpack.c.b16 %v2122, %v2120
    %v2207 = vpack.c.b16 %v2125, %v2123
    %v2208 = vpack.c.b16 %v2126, %v2124
    %v2209 = vpack.c.b16 %v2129, %v2127
    %v2210 = vpack.c.b16 %v2130, %v2128
    %v2211 = vpack.c.b16 %v2133, %v2131
    %v2212 = vpack.c.b16 %v2134, %v2132
    %v2213 = vpack.c.b16 %v2137, %v2135
    %v2214 = vpack.c.b16 %v2138, %v2136
    %v2215 = vpack.c.b16 %v2141, %v2139
    %v2216 = vpack.c.b16 %v2142, %v2140
    %v2217 = vpack.c.b16 %v2145, %v2143
    %v2218 = vpack.c.b16 %v2146, %v2144
    %v2219 = vpack.c.b16 %v2149, %v2147
    %v2220 = vpack.c.b16 %v2150, %v2148
    %v2221 = vpack.c.b16 %v2153, %v2151
    %v2222 = vpack.c.b16 %v2154, %v2152
    %v2223 = vpack.c.b16 %v2157, %v2155
    %v2224 = vpack.c.b16 %v2158, %v2156
    %v2225 = vpack.c.b16 %v2161, %v2159
    %v2226 = vpack.c.b16 %v2162, %v2160
    %2291 = vmatpush.bf16.msra.mxu0 %v2177
    %2292 = vmatpush.bf16.msra.mxu0 %v2175
    %2293 = vmatpush.bf16.msra.mxu0 %v2173
    %2294 = vmatpush.bf16.msra.mxu0 %v2171
    %2295 = vmatpush.bf16.msra.mxu0 %v2169
    %2296 = vmatpush.bf16.msra.mxu0 %v2167
    %2297 = vmatpush.bf16.msra.mxu0 %v2165
    %2298 = vmatpush.bf16.msra.mxu0 %v2163
    %2299 = vmatmul.bf16.gmra.mxu0 %v1897
    %v2300 = vpop.f32.mrf.mxu0
    %v2301 = vadd.f32 %v1967, %v2300
    %v2302 = vpop.f32.mrf.mxu0
    %v2303 = vadd.f32 %v1967, %v2302
    %2304 = vdwg.mxu0
    %2305 = vmatpush.bf16.msra.mxu0 %v2193
    %2306 = vmatpush.bf16.msra.mxu0 %v2191
    %2307 = vmatpush.bf16.msra.mxu0 %v2189
    %2308 = vmatpush.bf16.msra.mxu0 %v2187
    %2309 = vmatpush.bf16.msra.mxu0 %v2185
    %2310 = vmatpush.bf16.msra.mxu0 %v2183
    %2311 = vmatpush.bf16.msra.mxu0 %v2181
    %2312 = vmatpush.bf16.msra.mxu0 %v2179
    %2313 = vmatmul.bf16.gmra.mxu0 %v1898
    %v2314 = vpop.f32.mrf.mxu0
    %v2315 = vadd.f32 %v2301, %v2314
    %v2316 = vpop.f32.mrf.mxu0
    %v2317 = vadd.f32 %v2303, %v2316
    %2318 = vdwg.mxu0
    %2319 = vmatpush.bf16.msra.mxu0 %v2209
    %2320 = vmatpush.bf16.msra.mxu0 %v2207
    %2321 = vmatpush.bf16.msra.mxu0 %v2205
    %2322 = vmatpush.bf16.msra.mxu0 %v2203
    %2323 = vmatpush.bf16.msra.mxu0 %v2201
    %2324 = vmatpush.bf16.msra.mxu0 %v2199
    %2325 = vmatpush.bf16.msra.mxu0 %v2197
    %2326 = vmatpush.bf16.msra.mxu0 %v2195
    %2327 = vmatmul.bf16.gmra.mxu0 %v1899
    %v2328 = vpop.f32.mrf.mxu0
    %v2329 = vadd.f32 %v2315, %v2328
    %v2330 = vpop.f32.mrf.mxu0
    %v2331 = vadd.f32 %v2317, %v2330
    %2332 = vdwg.mxu0
    %2333 = vmatpush.bf16.msra.mxu0 %v2225
    %2334 = vmatpush.bf16.msra.mxu0 %v2223
    %2335 = vmatpush.bf16.msra.mxu0 %v2221
    %2336 = vmatpush.bf16.msra.mxu0 %v2219
    %2337 = vmatpush.bf16.msra.mxu0 %v2217
    %2338 = vmatpush.bf16.msra.mxu0 %v2215
    %2339 = vmatpush.bf16.msra.mxu0 %v2213
    %2340 = vmatpush.bf16.msra.mxu0 %v2211
    %2341 = vmatmul.bf16.gmra.mxu0 %v1900
    %v2342 = vpop.f32.mrf.mxu0
    %v2343 = vadd.f32 %v2329, %v2342
    %v2344 = vpop.f32.mrf.mxu0
    %v2345 = vadd.f32 %v2331, %v2344
    %2346 = vdwg.mxu0
    %2347 = vmatpush.bf16.msra.mxu0 %v2178
    %2348 = vmatpush.bf16.msra.mxu0 %v2176
    %2349 = vmatpush.bf16.msra.mxu0 %v2174
    %2350 = vmatpush.bf16.msra.mxu0 %v2172
    %2351 = vmatpush.bf16.msra.mxu0 %v2170
    %2352 = vmatpush.bf16.msra.mxu0 %v2168
    %2353 = vmatpush.bf16.msra.mxu0 %v2166
    %2354 = vmatpush.bf16.msra.mxu0 %v2164
    %2355 = vmatmul.bf16.gmra.mxu0 %v1897
    %v2356 = vpop.f32.mrf.mxu0
    %v2357 = vadd.f32 %v1968, %v2356
    %v2358 = vpop.f32.mrf.mxu0
    %v2359 = vadd.f32 %v1968, %v2358
    %2360 = vdwg.mxu0
    %2361 = vmatpush.bf16.msra.mxu0 %v2194
    %2362 = vmatpush.bf16.msra.mxu0 %v2192
    %2363 = vmatpush.bf16.msra.mxu0 %v2190
    %2364 = vmatpush.bf16.msra.mxu0 %v2188
    %2365 = vmatpush.bf16.msra.mxu0 %v2186
    %2366 = vmatpush.bf16.msra.mxu0 %v2184
    %2367 = vmatpush.bf16.msra.mxu0 %v2182
    %2368 = vmatpush.bf16.msra.mxu0 %v2180
    %2369 = vmatmul.bf16.gmra.mxu0 %v1898
    %v2370 = vpop.f32.mrf.mxu0
    %v2371 = vadd.f32 %v2357, %v2370
    %v2372 = vpop.f32.mrf.mxu0
    %v2373 = vadd.f32 %v2359, %v2372
    %2374 = vdwg.mxu0
    %2375 = vmatpush.bf16.msra.mxu0 %v2210
    %2376 = vmatpush.bf16.msra.mxu0 %v2208
    %2377 = vmatpush.bf16.msra.mxu0 %v2206
    %2378 = vmatpush.bf16.msra.mxu0 %v2204
    %2379 = vmatpush.bf16.msra.mxu0 %v2202
    %2380 = vmatpush.bf16.msra.mxu0 %v2200
    %2381 = vmatpush.bf16.msra.mxu0 %v2198
    %2382 = vmatpush.bf16.msra.mxu0 %v2196
    %2383 = vmatmul.bf16.gmra.mxu0 %v1899
    %v2384 = vpop.f32.mrf.mxu0
    %v2385 = vadd.f32 %v2371, %v2384
    %v2386 = vpop.f32.mrf.mxu0
    %v2387 = vadd.f32 %v2373, %v2386
    %2388 = vdwg.mxu0
    %2389 = vmatpush.bf16.msra.mxu0 %v2226
    %2390 = vmatpush.bf16.msra.mxu0 %v2224
    %2391 = vmatpush.bf16.msra.mxu0 %v2222
    %2392 = vmatpush.bf16.msra.mxu0 %v2220
    %2393 = vmatpush.bf16.msra.mxu0 %v2218
    %2394 = vmatpush.bf16.msra.mxu0 %v2216
    %2395 = vmatpush.bf16.msra.mxu0 %v2214
    %2396 = vmatpush.bf16.msra.mxu0 %v2212
    %2397 = vmatmul.bf16.gmra.mxu0 %v1900
    %v2398 = vpop.f32.mrf.mxu0
    %v2399 = vadd.f32 %v2385, %v2398
    %v2400 = vpop.f32.mrf.mxu0
    %v2401 = vadd.f32 %v2387, %v2400
    %2402 = vdwg.mxu0
    %v2403 = vmax.f32 %v2343, 0.0
    %v2404 = vmax.f32 %v2399, 0.0
    %v2405 = vmax.f32 %v2345, 0.0
    %v2406 = vmax.f32 %v2401, 0.0
    %v2407 = vpack.c.bf16 %v2405, %v2403
    %v2408 = vpack.c.bf16 %v2406, %v2404
    %v2409 = vld [vmem:[%s5] sm:$0xf]
    %v2410 = vld [vmem:[%s5 + $0x4] sm:$0xf]
    %v2411 = vld [vmem:[%s5 + $0x8] sm:$0xf]
    %v2412 = vld [vmem:[%s5 + $0xc] sm:$0xf]
    %v2413 = vld [vmem:[%s5 + $0x10] sm:$0xf]
    %v2414 = vld [vmem:[%s5 + $0x14] sm:$0xf]
    %v2415 = vld [vmem:[%s5 + $0x18] sm:$0xf]
    %v2416 = vld [vmem:[%s5 + $0x1c] sm:$0xf]
    %v2417 = vld [vmem:[%s5 + $0x20] sm:$0xf]
    %v2418 = vld [vmem:[%s5 + $0x24] sm:$0xf]
    %v2419 = vld [vmem:[%s5 + $0x28] sm:$0xf]
    %v2420 = vld [vmem:[%s5 + $0x2c] sm:$0xf]
    %v2421 = vld [vmem:[%s5 + $0x30] sm:$0xf]
    %v2422 = vld [vmem:[%s5 + $0x34] sm:$0xf]
    %v2423 = vld [vmem:[%s5 + $0x38] sm:$0xf]
    %v2424 = vld [vmem:[%s5 + $0x3c] sm:$0xf]
    %v2425 = vld [vmem:[%s5 + $0x40] sm:$0xf]
    %v2426 = vld [vmem:[%s5 + $0x44] sm:$0xf]
    %v2427 = vld [vmem:[%s5 + $0x48] sm:$0xf]
    %v2428 = vld [vmem:[%s5 + $0x4c] sm:$0xf]
    %v2429 = vld [vmem:[%s5 + $0x50] sm:$0xf]
    %v2430 = vld [vmem:[%s5 + $0x54] sm:$0xf]
    %v2431 = vld [vmem:[%s5 + $0x58] sm:$0xf]
    %v2432 = vld [vmem:[%s5 + $0x5c] sm:$0xf]
    %v2433 = vld [vmem:[%s5 + $0x60] sm:$0xf]
    %v2434 = vld [vmem:[%s5 + $0x64] sm:$0xf]
    %v2435 = vld [vmem:[%s5 + $0x68] sm:$0xf]
    %v2436 = vld [vmem:[%s5 + $0x6c] sm:$0xf]
    %v2437 = vld [vmem:[%s5 + $0x70] sm:$0xf]
    %v2438 = vld [vmem:[%s5 + $0x74] sm:$0xf]
    %v2439 = vld [vmem:[%s5 + $0x78] sm:$0xf]
    %v2440 = vld [vmem:[%s5 + $0x7c] sm:$0xf]
    %v2441 = vld [vmem:[%s6] sm:$0x1]
    %v2443 = vperm.slane %v2441, 0
    %v2477 = vunpack.c.l.b16 %v2409
    %v2478 = vunpack.c.l.b16 %v2410
    %v2479 = vunpack.c.l.b16 %v2411
    %v2480 = vunpack.c.l.b16 %v2412
    %v2481 = vunpack.c.l.b16 %v2413
    %v2482 = vunpack.c.l.b16 %v2414
    %v2483 = vunpack.c.l.b16 %v2415
    %v2484 = vunpack.c.l.b16 %v2416
    %v2485 = vunpack.c.l.b16 %v2417
    %v2486 = vunpack.c.l.b16 %v2418
    %v2487 = vunpack.c.l.b16 %v2419
    %v2488 = vunpack.c.l.b16 %v2420
    %v2489 = vunpack.c.l.b16 %v2421
    %v2490 = vunpack.c.l.b16 %v2422
    %v2491 = vunpack.c.l.b16 %v2423
    %v2492 = vunpack.c.l.b16 %v2424
    %v2493 = vunpack.c.l.b16 %v2425
    %v2494 = vunpack.c.l.b16 %v2426
    %v2495 = vunpack.c.l.b16 %v2427
    %v2496 = vunpack.c.l.b16 %v2428
    %v2497 = vunpack.c.l.b16 %v2429
    %v2498 = vunpack.c.l.b16 %v2430
    %v2499 = vunpack.c.l.b16 %v2431
    %v2500 = vunpack.c.l.b16 %v2432
    %v2501 = vunpack.c.l.b16 %v2433
    %v2502 = vunpack.c.l.b16 %v2434
    %v2503 = vunpack.c.l.b16 %v2435
    %v2504 = vunpack.c.l.b16 %v2436
    %v2505 = vunpack.c.l.b16 %v2437
    %v2506 = vunpack.c.l.b16 %v2438
    %v2507 = vunpack.c.l.b16 %v2439
    %v2508 = vunpack.c.l.b16 %v2440
    %v2509 = vpack.c.b16 %v2478, %v2477
    %v2510 = vpack.c.b16 %v2480, %v2479
    %v2511 = vpack.c.b16 %v2482, %v2481
    %v2512 = vpack.c.b16 %v2484, %v2483
    %v2513 = vpack.c.b16 %v2486, %v2485
    %v2514 = vpack.c.b16 %v2488, %v2487
    %v2515 = vpack.c.b16 %v2490, %v2489
    %v2516 = vpack.c.b16 %v2492, %v2491
    %v2517 = vpack.c.b16 %v2494, %v2493
    %v2518 = vpack.c.b16 %v2496, %v2495
    %v2519 = vpack.c.b16 %v2498, %v2497
    %v2520 = vpack.c.b16 %v2500, %v2499
    %v2521 = vpack.c.b16 %v2502, %v2501
    %v2522 = vpack.c.b16 %v2504, %v2503
    %v2523 = vpack.c.b16 %v2506, %v2505
    %v2524 = vpack.c.b16 %v2508, %v2507
    %2541 = vmatpush.bf16.msra.mxu0 %v2516
    %2542 = vmatpush.bf16.msra.mxu0 %v2515
    %2543 = vmatpush.bf16.msra.mxu0 %v2514
    %2544 = vmatpush.bf16.msra.mxu0 %v2513
    %2545 = vmatpush.bf16.msra.mxu0 %v2512
    %2546 = vmatpush.bf16.msra.mxu0 %v2511
    %2547 = vmatpush.bf16.msra.mxu0 %v2510
    %2548 = vmatpush.bf16.msra.mxu0 %v2509
    %2549 = vmatmul.bf16.gmra.mxu0 %v2407
    %v2550 = vpop.f32.mrf.mxu0
    %v2551 = vadd.f32 %v2443, %v2550
    %v2552 = vpop.f32.mrf.mxu0
    %v2553 = vadd.f32 %v2443, %v2552
    %2554 = vdwg.mxu0
    %2555 = vmatpush.bf16.msra.mxu0 %v2524
    %2556 = vmatpush.bf16.msra.mxu0 %v2523
    %2557 = vmatpush.bf16.msra.mxu0 %v2522
    %2558 = vmatpush.bf16.msra.mxu0 %v2521
    %2559 = vmatpush.bf16.msra.mxu0 %v2520
    %2560 = vmatpush.bf16.msra.mxu0 %v2519
    %2561 = vmatpush.bf16.msra.mxu0 %v2518
    %2562 = vmatpush.bf16.msra.mxu0 %v2517
    %2563 = vmatmul.bf16.gmra.mxu0 %v2408
    %v2564 = vpop.f32.mrf.mxu0
    %v2565 = vadd.f32 %v2551, %v2564
    %v2566 = vpop.f32.mrf.mxu0
    %v2567 = vadd.f32 %v2553, %v2566
    %2568 = vdwg.mxu0
    %v2569 = vmax.f32 %v2565, 0.0
    %v2570 = vmax.f32 %v2567, 0.0
    %v2571 = vpack.c.bf16 %v2570, %v2569
    %v2572 = vld [vmem:[%s7] sm:$0xf]
    %v2573 = vld [vmem:[%s7 + $0x4] sm:$0xf]
    %v2574 = vld [vmem:[%s7 + $0x8] sm:$0xf]
    %v2575 = vld [vmem:[%s7 + $0xc] sm:$0xf]
    %v2576 = vld [vmem:[%s7 + $0x10] sm:$0xf]
    %v2577 = vld [vmem:[%s7 + $0x14] sm:$0xf]
    %v2578 = vld [vmem:[%s7 + $0x18] sm:$0xf]
    %v2579 = vld [vmem:[%s7 + $0x1c] sm:$0xf]
    %v2580 = vld [vmem:[%s7 + $0x20] sm:$0xf]
    %v2581 = vld [vmem:[%s7 + $0x24] sm:$0xf]
    %v2582 = vld [vmem:[%s7 + $0x28] sm:$0xf]
    %v2583 = vld [vmem:[%s7 + $0x2c] sm:$0xf]
    %v2584 = vld [vmem:[%s7 + $0x30] sm:$0xf]
    %v2585 = vld [vmem:[%s7 + $0x34] sm:$0xf]
    %v2586 = vld [vmem:[%s7 + $0x38] sm:$0xf]
    %v2587 = vld [vmem:[%s7 + $0x3c] sm:$0xf]
    %v2588 = vld [vmem:[%s8] sm:$0x1]
    %v2590 = vperm.slane %v2588, 0
    %v2608 = vunpack.c.l.b16 %v2572
    %v2609 = vunpack.c.l.b16 %v2573
    %v2610 = vunpack.c.l.b16 %v2574
    %v2611 = vunpack.c.l.b16 %v2575
    %v2612 = vunpack.c.l.b16 %v2576
    %v2613 = vunpack.c.l.b16 %v2577
    %v2614 = vunpack.c.l.b16 %v2578
    %v2615 = vunpack.c.l.b16 %v2579
    %v2616 = vunpack.c.l.b16 %v2580
    %v2617 = vunpack.c.l.b16 %v2581
    %v2618 = vunpack.c.l.b16 %v2582
    %v2619 = vunpack.c.l.b16 %v2583
    %v2620 = vunpack.c.l.b16 %v2584
    %v2621 = vunpack.c.l.b16 %v2585
    %v2622 = vunpack.c.l.b16 %v2586
    %v2623 = vunpack.c.l.b16 %v2587
    %v2624 = vpack.c.b16 %v2609, %v2608
    %v2625 = vpack.c.b16 %v2611, %v2610
    %v2626 = vpack.c.b16 %v2613, %v2612
    %v2627 = vpack.c.b16 %v2615, %v2614
    %v2628 = vpack.c.b16 %v2617, %v2616
    %v2629 = vpack.c.b16 %v2619, %v2618
    %v2630 = vpack.c.b16 %v2621, %v2620
    %v2631 = vpack.c.b16 %v2623, %v2622
    %2640 = vmatpush.bf16.msra.mxu0 %v2631
    %2641 = vmatpush.bf16.msra.mxu0 %v2630
    %2642 = vmatpush.bf16.msra.mxu0 %v2629
    %2643 = vmatpush.bf16.msra.mxu0 %v2628
    %2644 = vmatpush.bf16.msra.mxu0 %v2627
    %2645 = vmatpush.bf16.msra.mxu0 %v2626
    %2646 = vmatpush.bf16.msra.mxu0 %v2625
    %2647 = vmatpush.bf16.msra.mxu0 %v2624
    %2648 = vmatmul.bf16.gmra.mxu0 %v2571
    %v2649 = vpop.f32.mrf.mxu0
    %v2650 = vadd.f32 %v2590, %v2649
    %v2651 = vpop.f32.mrf.mxu0
    %v2652 = vadd.f32 %v2590, %v2651
    %2653 = vdwg.mxu0
    %v2654 = vmax.f32 %v2650, 0.0
    %v2655 = vmax.f32 %v2652, 0.0
    %v2656 = vpack.c.bf16 %v2655, %v2654
    %v2657 = vld [vmem:[#allocation7] sm:$0xf]
    %v2658 = vld [vmem:[#allocation7 + $0x4] sm:$0xf]
    %v2659 = vld [vmem:[#allocation7 + $0x8] sm:$0xf]
    %v2660 = vld [vmem:[#allocation7 + $0xc] sm:$0xf]
    %v2661 = vld [vmem:[#allocation7 + $0x10] sm:$0xf]
    %v2662 = vld [vmem:[#allocation7 + $0x14] sm:$0xf]
    %v2663 = vld [vmem:[#allocation7 + $0x18] sm:$0xf]
    %v2664 = vld [vmem:[#allocation7 + $0x1c] sm:$0xf]
    %v2665 = vld [vmem:[#allocation7 + $0x20] sm:$0xf]
    %v2666 = vld [vmem:[#allocation7 + $0x24] sm:$0xf]
    %v2667 = vld [vmem:[#allocation7 + $0x28] sm:$0xf]
    %v2668 = vld [vmem:[#allocation7 + $0x2c] sm:$0xf]
    %v2669 = vld [vmem:[#allocation7 + $0x30] sm:$0xf]
    %v2670 = vld [vmem:[#allocation7 + $0x34] sm:$0xf]
    %v2671 = vld [vmem:[#allocation7 + $0x38] sm:$0xf]
    %v2672 = vld [vmem:[#allocation7 + $0x3c] sm:$0xf]
    %v2673 = vld [vmem:[%s10] sm:$0x1]
    %v2675 = vperm.slane %v2673, 0
    %v2693 = vunpack.c.l.b16 %v2657
    %v2694 = vunpack.c.l.b16 %v2658
    %v2695 = vunpack.c.l.b16 %v2659
    %v2696 = vunpack.c.l.b16 %v2660
    %v2697 = vunpack.c.l.b16 %v2661
    %v2698 = vunpack.c.l.b16 %v2662
    %v2699 = vunpack.c.l.b16 %v2663
    %v2700 = vunpack.c.l.b16 %v2664
    %v2701 = vunpack.c.l.b16 %v2665
    %v2702 = vunpack.c.l.b16 %v2666
    %v2703 = vunpack.c.l.b16 %v2667
    %v2704 = vunpack.c.l.b16 %v2668
    %v2705 = vunpack.c.l.b16 %v2669
    %v2706 = vunpack.c.l.b16 %v2670
    %v2707 = vunpack.c.l.b16 %v2671
    %v2708 = vunpack.c.l.b16 %v2672
    %v2709 = vpack.c.b16 %v2694, %v2693
    %v2710 = vpack.c.b16 %v2696, %v2695
    %v2711 = vpack.c.b16 %v2698, %v2697
    %v2712 = vpack.c.b16 %v2700, %v2699
    %v2713 = vpack.c.b16 %v2702, %v2701
    %v2714 = vpack.c.b16 %v2704, %v2703
    %v2715 = vpack.c.b16 %v2706, %v2705
    %v2716 = vpack.c.b16 %v2708, %v2707
    %2725 = vmatpush.bf16.msra.mxu0 %v2716
    %2726 = vmatpush.bf16.msra.mxu0 %v2715
    %2727 = vmatpush.bf16.msra.mxu0 %v2714
    %2728 = vmatpush.bf16.msra.mxu0 %v2713
    %2729 = vmatpush.bf16.msra.mxu0 %v2712
    %2730 = vmatpush.bf16.msra.mxu0 %v2711
    %2731 = vmatpush.bf16.msra.mxu0 %v2710
    %2732 = vmatpush.bf16.msra.mxu0 %v2709
    %2733 = vmatmul.bf16.gmra.mxu0 %v2656
    %v2734 = vpop.f32.mrf.mxu0
    %v2735 = vadd.f32 %v2675, %v2734
    %v2736 = vpop.f32.mrf.mxu0
    %v2737 = vadd.f32 %v2675, %v2736
    %2738 = vdwg.mxu0
    %2739 = vst [vmem:[%s11] sm:$0xff] %v2735
    %2740 = vst [vmem:[%s11 + $0x8] sm:$0xff] %v2737
    // Predicated region
    $region62: #{mlp_shallow_forward.1} parent=1 // pred_check
      _
    $region63: #{mlp_shallow_forward.1} parent=1 // pred_check_branch
      %2742 = sbr.rel (0) target = $region65
    $region64: #{mlp_shallow_forward.1} parent=1 // pred_region
      _
    $region65: #{mlp_shallow_forward.1} parent=1 // pred_fallthru
      _
    // Predicated region
    $region66: #{mlp_shallow_forward.1} parent=1 // pred_check
      _
    $region67: #{mlp_shallow_forward.1} parent=1 // pred_check_branch
      %2744 = sbr.rel (0) target = $region69
    $region68: #{mlp_shallow_forward.1} parent=1 // pred_region
      _
    $region69: #{mlp_shallow_forward.1} parent=1 // pred_fallthru
      _
    %2745 = vsyncpa [#allocation3], 1
    %2746 = vsyncpa [#allocation5], 1
    %2747 = vsyncpa [#allocation8], 1

</llo_original>
